<compile_context>
chip_gen: v6e
topology: v6e:2x2x1
jax: 0.10.0
libtpu: 0.0.40
codegen_flags: <defaults>
</compile_context>

<pallas_src>
import jax
import jax.numpy as jnp
from jax.experimental import pallas as pl
from jax.experimental.pallas import tpu as pltpu


def meta_module_kernel(all_mem_ref, last_mem_ref, u_w_ref, w_w_ref, v_w_ref,
                       m_w_ref, m_b_ref, out_ref):
    BT, S, H = all_mem_ref.shape

    all_mem = all_mem_ref[...]                       # [BT, S, H]
    last_mem = last_mem_ref[...]                     # [BT, H]

    # ---- U_meta / W_meta projections (dropout == identity in eval mode) ----
    all_proj = jnp.dot(all_mem.reshape(BT * S, H), u_w_ref[...],
                       preferred_element_type=jnp.float32).reshape(BT, S, H)
    last_proj = jnp.dot(last_mem, w_w_ref[...],
                        preferred_element_type=jnp.float32)          # [BT, H]

    # tanh(U x_t + W h_last); broadcast the last-memory projection over seq.
    output_ere = jnp.tanh(all_proj + last_proj[:, None, :])          # [BT, S, H]

    # ---- V_meta score: batched MXU contraction over H ('bqd,bkd->bqk') ----
    v_row = jnp.broadcast_to(v_w_ref[...][None, :, :], (BT, 1, H))   # [BT, 1, H]
    scores = jnp.einsum('boh,bsh->bos', v_row, output_ere,
                        preferred_element_type=jnp.float32)          # [BT, 1, S]

    # ---- softmax over the seq dim (lane axis here) ----
    m = jnp.max(scores, axis=-1, keepdims=True)                      # [BT, 1, 1]
    e = jnp.exp(scores - m)                                          # [BT, 1, S]
    denom = jnp.sum(e, axis=-1, keepdims=True)                       # [BT, 1, 1]
    alpha = e * pl.reciprocal(denom)                                 # [BT, 1, S]

    # ---- attention-weighted sum over seq as batched MXU matmul ('bqk,bkd->bqd')
    attended = jnp.einsum('bos,bsh->boh', alpha, all_mem,
                          preferred_element_type=jnp.float32)        # [BT, 1, H]
    attended = attended.reshape(BT, H)                               # [BT, H]

    # ---- Meta linear (+ bias; pass zero bias for 'single' mode) ----
    out = jnp.dot(attended, m_w_ref[...],
                  preferred_element_type=jnp.float32) + m_b_ref[...] # [BT, O]
    out_ref[...] = out.astype(out_ref.dtype)


@jax.jit
def meta_module_forward(all_memory, last_memory, u_w_t, w_w_t, v_w, m_w_t, m_b2d):
    """all_memory [B,S,H], last_memory [B,H]; u_w_t/w_w_t [H,H] (pre-transposed),
    v_w [1,H] (PyTorch layout), m_w_t [H,O] (pre-transposed), m_b2d [1,O]."""
    B, S, H = all_memory.shape
    O = m_w_t.shape[1]

    # Tile the batch: large-B calls stream batch tiles through VMEM with
    # double-buffered DMA and get sharded across TensorCores on v7x.
    BT = 8 if B % 8 == 0 else B
    grid = (B // BT,)

    def resident2d(shape):
        return pl.BlockSpec(shape, lambda i: (0, 0))

    return pl.pallas_call(
        meta_module_kernel,
        out_shape=jax.ShapeDtypeStruct((B, O), jnp.float32),
        grid=grid,
        in_specs=[
            pl.BlockSpec((BT, S, H), lambda i: (i, 0, 0)),   # all_memory (tiled over B)
            pl.BlockSpec((BT, H), lambda i: (i, 0)),         # last_memory (tiled over B)
            resident2d((H, H)),                              # U_meta.T   (resident)
            resident2d((H, H)),                              # W_meta.T   (resident)
            resident2d((1, H)),                              # V_meta     (resident)
            resident2d((H, O)),                              # Meta.T     (resident)
            resident2d((1, O)),                              # Meta bias  (resident)
        ],
        out_specs=pl.BlockSpec((BT, O), lambda i: (i, 0)),
        compiler_params=pltpu.CompilerParams(
            dimension_semantics=("parallel",)),
    )(all_memory, last_memory, u_w_t, w_w_t, v_w, m_w_t, m_b2d)


if __name__ == "__main__":
    B, S, H = 16, 8, 32            # batch, seq_len, hidden_size
    mode = "multiple"              # 'multiple' -> Meta: Linear(H, 4) with bias
    O = 4 if mode == "multiple" else 2

    key = jax.random.PRNGKey(0)
    ks = jax.random.split(key, 7)

    all_memory = jax.random.normal(ks[0], (B, S, H), jnp.float32)
    last_memory = jax.random.normal(ks[1], (B, H), jnp.float32)

    # Deterministic "xavier-like" init (PyTorch Linear weight layout is [out, in]).
    U_w = jax.random.normal(ks[2], (H, H), jnp.float32) / jnp.sqrt(H)
    W_w = jax.random.normal(ks[3], (H, H), jnp.float32) / jnp.sqrt(H)
    V_w = jax.random.normal(ks[4], (1, H), jnp.float32) / jnp.sqrt(H)
    M_w = jax.random.normal(ks[5], (O, H), jnp.float32) / jnp.sqrt(H)
    M_b = (jax.random.normal(ks[6], (O,), jnp.float32) * 0.1
           if mode == "multiple" else jnp.zeros((O,), jnp.float32))

    out = meta_module_forward(all_memory, last_memory,
                              U_w.T, W_w.T, V_w, M_w.T, M_b.reshape(1, O))
    jax.block_until_ready(out)

    # ---- pure-JAX reference (mirrors the PyTorch forward in eval mode) ----
    ap = all_memory @ U_w.T                              # U_meta
    lp = last_memory @ W_w.T                             # W_meta
    ere = jnp.tanh(ap + lp[:, None, :])
    sc = ere @ V_w.T                                     # [B, S, 1]
    alpha = jax.nn.softmax(sc, axis=1)                   # softmax over seq dim
    attended = jnp.sum(alpha * all_memory, axis=1)       # [B, H]
    ref = attended @ M_w.T + M_b                         # [B, O]

    err = float(jnp.max(jnp.abs(out - ref)))
    assert jnp.allclose(out, ref, atol=1e-5), err
    print("KERNEL_OK")
</pallas_src>

<mosaic_0001>
module attributes {stable_mosaic.version = 11 : i64} {
  func.func @meta_module_kernel(%arg0: i32, %arg1: memref<8x8x32xf32, #tpu.memory_space<vmem>>, %arg2: memref<8x32xf32, #tpu.memory_space<vmem>>, %arg3: memref<32x32xf32, #tpu.memory_space<vmem>>, %arg4: memref<32x32xf32, #tpu.memory_space<vmem>>, %arg5: memref<1x32xf32, #tpu.memory_space<vmem>>, %arg6: memref<32x4xf32, #tpu.memory_space<vmem>>, %arg7: memref<1x4xf32, #tpu.memory_space<vmem>>, %arg8: memref<8x4xf32, #tpu.memory_space<vmem>>) attributes {dimension_semantics = [#tpu.dimension_semantics<parallel>], iteration_bounds = array<i64: 2>, scalar_prefetch = 0 : i64, scratch_operands = 0 : i64, tpu.core_type = #tpu.core_type<tc>, window_params = [{transform_indices = @transform_0, window_bounds = array<i64: 8, 8, 32>}, {transform_indices = @transform_1, window_bounds = array<i64: 8, 32>}, {pipeline_mode = #tpu.pipeline_mode<synchronous>, transform_indices = @transform_2, window_bounds = array<i64: 32, 32>}, {pipeline_mode = #tpu.pipeline_mode<synchronous>, transform_indices = @transform_3, window_bounds = array<i64: 32, 32>}, {pipeline_mode = #tpu.pipeline_mode<synchronous>, transform_indices = @transform_4, window_bounds = array<i64: 1, 32>}, {pipeline_mode = #tpu.pipeline_mode<synchronous>, transform_indices = @transform_5, window_bounds = array<i64: 32, 4>}, {pipeline_mode = #tpu.pipeline_mode<synchronous>, transform_indices = @transform_6, window_bounds = array<i64: 1, 4>}, {transform_indices = @transform_7, window_bounds = array<i64: 8, 4>}]} {
    %c0 = arith.constant 0 : index
    %c0_0 = arith.constant 0 : index
    %c0_1 = arith.constant 0 : index
    %0 = vector.load %arg1[%c0, %c0_0, %c0_1] : memref<8x8x32xf32, #tpu.memory_space<vmem>>, vector<8x8x32xf32>
    %c0_2 = arith.constant 0 : index
    %c0_3 = arith.constant 0 : index
    %1 = vector.load %arg2[%c0_2, %c0_3] : memref<8x32xf32, #tpu.memory_space<vmem>>, vector<8x32xf32>
    %2 = vector.shape_cast %0 : vector<8x8x32xf32> to vector<64x32xf32>
    %c0_4 = arith.constant 0 : index
    %c0_5 = arith.constant 0 : index
    %3 = vector.load %arg3[%c0_4, %c0_5] : memref<32x32xf32, #tpu.memory_space<vmem>>, vector<32x32xf32>
    %cst = arith.constant dense<0.000000e+00> : vector<64x32xf32>
    %4 = tpu.matmul %2, %3, %cst {dimension_numbers = #tpu.dot_dimension_numbers<[1], [0], [0], [1], [0, 0, 1, 1], [], []>} : vector<64x32xf32>, vector<32x32xf32>, vector<64x32xf32> -> vector<64x32xf32>
    %5 = vector.shape_cast %4 : vector<64x32xf32> to vector<8x8x32xf32>
    %c0_6 = arith.constant 0 : index
    %c0_7 = arith.constant 0 : index
    %6 = vector.load %arg4[%c0_6, %c0_7] : memref<32x32xf32, #tpu.memory_space<vmem>>, vector<32x32xf32>
    %cst_8 = arith.constant dense<0.000000e+00> : vector<8x32xf32>
    %7 = tpu.matmul %1, %6, %cst_8 {dimension_numbers = #tpu.dot_dimension_numbers<[1], [0], [0], [1], [0, 0, 1, 1], [], []>} : vector<8x32xf32>, vector<32x32xf32>, vector<8x32xf32> -> vector<8x32xf32>
    %8 = vector.shape_cast %7 : vector<8x32xf32> to vector<8x1x32xf32>
    %9 = vector.broadcast %8 : vector<8x1x32xf32> to vector<8x8x32xf32>
    %10 = arith.addf %5, %9 : vector<8x8x32xf32>
    %11 = math.tanh %10 : vector<8x8x32xf32>
    %c0_9 = arith.constant 0 : index
    %c0_10 = arith.constant 0 : index
    %12 = vector.load %arg5[%c0_9, %c0_10] : memref<1x32xf32, #tpu.memory_space<vmem>>, vector<1x32xf32>
    %13 = vector.shape_cast %12 : vector<1x32xf32> to vector<1x1x32xf32>
    %14 = vector.shape_cast %13 : vector<1x1x32xf32> to vector<1x1x32xf32>
    %15 = vector.broadcast %14 : vector<1x1x32xf32> to vector<8x1x32xf32>
    "tpu.trace_start"() <{level = 10 : i32, message = "boh,bsh->bos"}> : () -> ()
    %cst_11 = arith.constant dense<0.000000e+00> : vector<8x1x8xf32>
    %16 = tpu.matmul %15, %11, %cst_11 {dimension_numbers = #tpu.dot_dimension_numbers<[2], [2], [1], [1], [0, 0, 0, 1, 1, 1], [0], [0]>} : vector<8x1x32xf32>, vector<8x8x32xf32>, vector<8x1x8xf32> -> vector<8x1x8xf32>
    "tpu.trace_stop"() : () -> ()
    %cst_12 = arith.constant dense<0xFF800000> : vector<8x1xf32>
    %17 = vector.multi_reduction <maximumf>, %16, %cst_12 [2] : vector<8x1x8xf32> to vector<8x1xf32>
    %18 = vector.shape_cast %17 : vector<8x1xf32> to vector<8x1x1xf32>
    %19 = vector.broadcast %18 : vector<8x1x1xf32> to vector<8x1x8xf32>
    %20 = arith.subf %16, %19 : vector<8x1x8xf32>
    %21 = math.exp %20 : vector<8x1x8xf32>
    %cst_13 = arith.constant dense<0.000000e+00> : vector<8x1xf32>
    %22 = vector.multi_reduction <add>, %21, %cst_13 [2] : vector<8x1x8xf32> to vector<8x1xf32>
    %23 = vector.shape_cast %22 : vector<8x1xf32> to vector<8x1x1xf32>
    %24 = tpu.reciprocal %23 : vector<8x1x1xf32> -> vector<8x1x1xf32>
    %25 = vector.broadcast %24 : vector<8x1x1xf32> to vector<8x1x8xf32>
    %26 = arith.mulf %21, %25 : vector<8x1x8xf32>
    "tpu.trace_start"() <{level = 10 : i32, message = "bos,bsh->boh"}> : () -> ()
    %cst_14 = arith.constant dense<0.000000e+00> : vector<8x1x32xf32>
    %27 = tpu.matmul %26, %0, %cst_14 {dimension_numbers = #tpu.dot_dimension_numbers<[2], [1], [1], [2], [0, 0, 0, 1, 1, 2], [0], [0]>} : vector<8x1x8xf32>, vector<8x8x32xf32>, vector<8x1x32xf32> -> vector<8x1x32xf32>
    "tpu.trace_stop"() : () -> ()
    %28 = vector.shape_cast %27 : vector<8x1x32xf32> to vector<8x32xf32>
    %c0_15 = arith.constant 0 : index
    %c0_16 = arith.constant 0 : index
    %29 = vector.load %arg6[%c0_15, %c0_16] : memref<32x4xf32, #tpu.memory_space<vmem>>, vector<32x4xf32>
    %cst_17 = arith.constant dense<0.000000e+00> : vector<8x4xf32>
    %30 = tpu.matmul %28, %29, %cst_17 {dimension_numbers = #tpu.dot_dimension_numbers<[1], [0], [0], [1], [0, 0, 1, 1], [], []>} : vector<8x32xf32>, vector<32x4xf32>, vector<8x4xf32> -> vector<8x4xf32>
    %c0_18 = arith.constant 0 : index
    %c0_19 = arith.constant 0 : index
    %31 = vector.load %arg7[%c0_18, %c0_19] : memref<1x4xf32, #tpu.memory_space<vmem>>, vector<1x4xf32>
    %32 = vector.broadcast %31 : vector<1x4xf32> to vector<8x4xf32>
    %33 = arith.addf %30, %32 : vector<8x4xf32>
    %c0_20 = arith.constant 0 : index
    %c0_21 = arith.constant 0 : index
    %34 = vector.load %arg8[%c0_20, %c0_21] : memref<8x4xf32, #tpu.memory_space<vmem>>, vector<8x4xf32>
    tpu.vector_store %arg8[%c0_20, %c0_21], %33 {strides = array<i32>} : memref<8x4xf32, #tpu.memory_space<vmem>>, vector<8x4xf32>,
    return
  }
  func.func @transform_0(%arg0: i32) -> (i32, i32, i32) {
    %c0_i32 = arith.constant 0 : i32
    %c0_i32_0 = arith.constant 0 : i32
    %c0_i32_1 = arith.constant 0 : i32
    return %arg0, %c0_i32, %c0_i32_0 : i32, i32, i32
  }
  func.func @transform_1(%arg0: i32) -> (i32, i32) {
    %c0_i32 = arith.constant 0 : i32
    %c0_i32_0 = arith.constant 0 : i32
    return %arg0, %c0_i32 : i32, i32
  }
  func.func @transform_2(%arg0: i32) -> (i32, i32) {
    %c0_i32 = arith.constant 0 : i32
    %c0_i32_0 = arith.constant 0 : i32
    %c0_i32_1 = arith.constant 0 : i32
    return %c0_i32, %c0_i32_0 : i32, i32
  }
  func.func @transform_3(%arg0: i32) -> (i32, i32) {
    %c0_i32 = arith.constant 0 : i32
    %c0_i32_0 = arith.constant 0 : i32
    %c0_i32_1 = arith.constant 0 : i32
    return %c0_i32, %c0_i32_0 : i32, i32
  }
  func.func @transform_4(%arg0: i32) -> (i32, i32) {
    %c0_i32 = arith.constant 0 : i32
    %c0_i32_0 = arith.constant 0 : i32
    %c0_i32_1 = arith.constant 0 : i32
    return %c0_i32, %c0_i32_0 : i32, i32
  }
  func.func @transform_5(%arg0: i32) -> (i32, i32) {
    %c0_i32 = arith.constant 0 : i32
    %c0_i32_0 = arith.constant 0 : i32
    %c0_i32_1 = arith.constant 0 : i32
    return %c0_i32, %c0_i32_0 : i32, i32
  }
  func.func @transform_6(%arg0: i32) -> (i32, i32) {
    %c0_i32 = arith.constant 0 : i32
    %c0_i32_0 = arith.constant 0 : i32
    %c0_i32_1 = arith.constant 0 : i32
    return %c0_i32, %c0_i32_0 : i32, i32
  }
  func.func @transform_7(%arg0: i32) -> (i32, i32) {
    %c0_i32 = arith.constant 0 : i32
    %c0_i32_0 = arith.constant 0 : i32
    return %arg0, %c0_i32 : i32, i32
  }
}

</mosaic_0001>

<llo_original>
// kernel: meta_module_forward.1
$region0: #{meta_module_forward.1}
  #allocation0 [shape = 'u32[]', space=smem, size = 0x4, offset = 0x4, fixed_abs, tag = 'smem constant byte address 0x4 - core index']
  #allocation1 [shape = 'u32[144,128]{1,0:T(1,128)}', space=vmem, size = 0x12000, scoped, tag = 'internal scratch']
  %s0 = inlined_call_operand.hbm [shape: f32[16,8,32], index: 0, kind: input, shape index: {}]
  %s1 = inlined_call_operand.hbm [shape: f32[16,32], index: 1, kind: input, shape index: {}]
  %s2 = inlined_call_operand.vmem [shape: f32[32,32], index: 2, kind: input, shape index: {}]
  %s3 = inlined_call_operand.hbm [shape: f32[32,32], index: 3, kind: input, shape index: {}]
  %s4 = inlined_call_operand.vmem [shape: f32[1,32], index: 4, kind: input, shape index: {}]
  %s5 = inlined_call_operand.vmem [shape: f32[32,4], index: 5, kind: input, shape index: {}]
  %s6 = inlined_call_operand.vmem [shape: f32[1,4], index: 6, kind: input, shape index: {}]
  %s7 = inlined_call_operand.vmem [shape: f32[16,4], index: 7, kind: output, shape index: {}]
  %s8 = sld [smem:[#allocation0]]
  $region73: #{meta_module_forward.1} parent=0
    _
  %s10 = ssub.s32 1, %s8
  %s11 = scalar_select 0, %s10, %s8
  $region1: #{meta_module_forward.1} parent=0
    #allocation2 [shape = 'u8[65536]{0}', space=vmem, size = 0x10000, scoped, tag = 'input window, operand 0']
    #allocation3 [shape = 's32[2]{0}', space=sflag, size = 0x8, scoped, tag = 'scoped memory for meta_module_forward.1']
    #allocation4 [shape = 'u8[8192]{0}', space=vmem, size = 0x2000, scoped, tag = 'input window, operand 1']
    #allocation5 [shape = 's32[2]{0}', space=sflag, size = 0x8, scoped, tag = 'scoped memory for meta_module_forward.1']
    #allocation6 [shape = 'u8[16384]{0}', space=vmem, size = 0x4000, scoped, tag = 'input window, operand 3, single buffered']
    %12 = vsyncpa [#allocation3], 0
    %s13 = scalar_lea.sflag [#allocation3], 1
    %14 = vsyncpa %s13, 0
    %15 = vsyncpa [#allocation5], 0
    %s16 = scalar_lea.sflag [#allocation5], 1
    %17 = vsyncpa %s16, 0
    loop: start=0, step=1, limit=4
    $region2: #{meta_module_forward.1} parent=1 // loop_pre_header
      _
    $region3: #{meta_module_forward.1} parent=1 // loop_header
      %s19 = sphi 0, %s23
      %p20 = scmp.ge.s32.totalorder %s19, 4
      %s29 = sphi 0, %s31
      %s32 = sphi 0, %s29
      %s33 = sphi 0, %s32
      %s49 = sphi 0, %s33
      %s55 = sphi 0, %s57
      %s58 = sphi 0, %s55
      %s59 = sphi 0, %s58
      %s75 = sphi 0, %s59
      %s79 = sphi 0, %s79
      %s81 = sphi 0, %s79
      %s82 = sphi 0, %s81
      %s96 = sphi 0, %s82
      %s100 = sphi 0, %s100
      %s102 = sphi 0, %s100
      %s103 = sphi 0, %s102
      %s117 = sphi 0, %s103
      %s121 = sphi 0, %s121
      %s123 = sphi 0, %s121
      %s124 = sphi 0, %s123
      %s138 = sphi 0, %s124
      %s142 = sphi 0, %s142
      %s144 = sphi 0, %s142
      %s145 = sphi 0, %s144
      %s159 = sphi 0, %s145
      %s163 = sphi 0, %s163
      %s165 = sphi 0, %s163
      %s166 = sphi 0, %s165
      %s180 = sphi 0, %s166
      %s186 = sphi 0, %s188
      %s189 = sphi 0, %s186
      %s190 = sphi 0, %s189
      %s206 = sphi 0, %s190
    $region4: #{meta_module_forward.1} parent=1 // loop_header_branch
      %22 = sbr.rel (%p20) target = $region8
    $region5: #{meta_module_forward.1} parent=1 // loop_body
      %s24 = ssub.s32 %s19, 1
      %s25 = ssub.s32 %s19, 2
      %s26 = sadd.s32 %s19, 1
      %s27 = ssub.s32 %s19, %s26
      %p28 = scmp.eq.s32.totalorder %s27, 0
      %s30 = sadd.s32 %s29, 1
      %s31 = scalar_select %p28, %s29, %s30
      %p34 = pneg %p28
      %p35 = scmp.eq.s32.totalorder %s19, 1
      %p36 = por %p34, %p35
      %p37 = scmp.ne.s32.totalorder %s29, %s32
      %p38 = scmp.eq.s32.totalorder %s19, 0
      %p39 = por %p37, %p38
      %p40 = scmp.ne.s32.totalorder %s29, %s32
      %p41 = scmp.eq.s32.totalorder %s24, 1
      %p42 = por %p40, %p41
      %p43 = scmp.ne.s32.totalorder %s32, %s33
      %p44 = scmp.eq.s32.totalorder %s24, 0
      %p45 = por %p43, %p44
      %p46 = scmp.ne.s32.totalorder %s32, %s33
      %p47 = scmp.eq.s32.totalorder %s25, 1
      %p48 = por %p46, %p47
      %p50 = scmp.ne.s32.totalorder %s33, %s49
      %p51 = scmp.eq.s32.totalorder %s25, 0
      %p52 = por %p50, %p51
      %s53 = ssub.s32 %s19, %s26
      %p54 = scmp.eq.s32.totalorder %s53, 0
      %s56 = sadd.s32 %s55, 1
      %s57 = scalar_select %p54, %s55, %s56
      %p60 = pneg %p54
      %p61 = scmp.eq.s32.totalorder %s19, 1
      %p62 = por %p60, %p61
      %p63 = scmp.ne.s32.totalorder %s55, %s58
      %p64 = scmp.eq.s32.totalorder %s19, 0
      %p65 = por %p63, %p64
      %p66 = scmp.ne.s32.totalorder %s55, %s58
      %p67 = scmp.eq.s32.totalorder %s24, 1
      %p68 = por %p66, %p67
      %p69 = scmp.ne.s32.totalorder %s58, %s59
      %p70 = scmp.eq.s32.totalorder %s24, 0
      %p71 = por %p69, %p70
      %p72 = scmp.ne.s32.totalorder %s58, %s59
      %p73 = scmp.eq.s32.totalorder %s25, 1
      %p74 = por %p72, %p73
      %p76 = scmp.ne.s32.totalorder %s59, %s75
      %p77 = scmp.eq.s32.totalorder %s25, 0
      %p78 = por %p76, %p77
      %s80 = sadd.s32 %s79, 1
      %p83 = scmp.eq.s32.totalorder %s19, 1
      %p84 = scmp.ne.s32.totalorder %s79, %s81
      %p85 = scmp.eq.s32.totalorder %s19, 0
      %p86 = por %p84, %p85
      %p87 = scmp.ne.s32.totalorder %s79, %s81
      %p88 = scmp.eq.s32.totalorder %s24, 1
      %p89 = por %p87, %p88
      %p90 = scmp.ne.s32.totalorder %s81, %s82
      %p91 = scmp.eq.s32.totalorder %s24, 0
      %p92 = por %p90, %p91
      %p93 = scmp.ne.s32.totalorder %s81, %s82
      %p94 = scmp.eq.s32.totalorder %s25, 1
      %p95 = por %p93, %p94
      %p97 = scmp.ne.s32.totalorder %s82, %s96
      %p98 = scmp.eq.s32.totalorder %s25, 0
      %p99 = por %p97, %p98
      %s101 = sadd.s32 %s100, 1
      %p104 = scmp.eq.s32.totalorder %s19, 1
      %p105 = scmp.ne.s32.totalorder %s100, %s102
      %p106 = scmp.eq.s32.totalorder %s19, 0
      %p107 = por %p105, %p106
      %p108 = scmp.ne.s32.totalorder %s100, %s102
      %p109 = scmp.eq.s32.totalorder %s24, 1
      %p110 = por %p108, %p109
      %p111 = scmp.ne.s32.totalorder %s102, %s103
      %p112 = scmp.eq.s32.totalorder %s24, 0
      %p113 = por %p111, %p112
      %p114 = scmp.ne.s32.totalorder %s102, %s103
      %p115 = scmp.eq.s32.totalorder %s25, 1
      %p116 = por %p114, %p115
      %p118 = scmp.ne.s32.totalorder %s103, %s117
      %p119 = scmp.eq.s32.totalorder %s25, 0
      %p120 = por %p118, %p119
      %s122 = sadd.s32 %s121, 1
      %p125 = scmp.eq.s32.totalorder %s19, 1
      %p126 = scmp.ne.s32.totalorder %s121, %s123
      %p127 = scmp.eq.s32.totalorder %s19, 0
      %p128 = por %p126, %p127
      %p129 = scmp.ne.s32.totalorder %s121, %s123
      %p130 = scmp.eq.s32.totalorder %s24, 1
      %p131 = por %p129, %p130
      %p132 = scmp.ne.s32.totalorder %s123, %s124
      %p133 = scmp.eq.s32.totalorder %s24, 0
      %p134 = por %p132, %p133
      %p135 = scmp.ne.s32.totalorder %s123, %s124
      %p136 = scmp.eq.s32.totalorder %s25, 1
      %p137 = por %p135, %p136
      %p139 = scmp.ne.s32.totalorder %s124, %s138
      %p140 = scmp.eq.s32.totalorder %s25, 0
      %p141 = por %p139, %p140
      %s143 = sadd.s32 %s142, 1
      %p146 = scmp.eq.s32.totalorder %s19, 1
      %p147 = scmp.ne.s32.totalorder %s142, %s144
      %p148 = scmp.eq.s32.totalorder %s19, 0
      %p149 = por %p147, %p148
      %p150 = scmp.ne.s32.totalorder %s142, %s144
      %p151 = scmp.eq.s32.totalorder %s24, 1
      %p152 = por %p150, %p151
      %p153 = scmp.ne.s32.totalorder %s144, %s145
      %p154 = scmp.eq.s32.totalorder %s24, 0
      %p155 = por %p153, %p154
      %p156 = scmp.ne.s32.totalorder %s144, %s145
      %p157 = scmp.eq.s32.totalorder %s25, 1
      %p158 = por %p156, %p157
      %p160 = scmp.ne.s32.totalorder %s145, %s159
      %p161 = scmp.eq.s32.totalorder %s25, 0
      %p162 = por %p160, %p161
      %s164 = sadd.s32 %s163, 1
      %p167 = scmp.eq.s32.totalorder %s19, 1
      %p168 = scmp.ne.s32.totalorder %s163, %s165
      %p169 = scmp.eq.s32.totalorder %s19, 0
      %p170 = por %p168, %p169
      %p171 = scmp.ne.s32.totalorder %s163, %s165
      %p172 = scmp.eq.s32.totalorder %s24, 1
      %p173 = por %p171, %p172
      %p174 = scmp.ne.s32.totalorder %s165, %s166
      %p175 = scmp.eq.s32.totalorder %s24, 0
      %p176 = por %p174, %p175
      %p177 = scmp.ne.s32.totalorder %s165, %s166
      %p178 = scmp.eq.s32.totalorder %s25, 1
      %p179 = por %p177, %p178
      %p181 = scmp.ne.s32.totalorder %s166, %s180
      %p182 = scmp.eq.s32.totalorder %s25, 0
      %p183 = por %p181, %p182
      %s184 = ssub.s32 %s19, %s26
      %p185 = scmp.eq.s32.totalorder %s184, 0
      %s187 = sadd.s32 %s186, 1
      %s188 = scalar_select %p185, %s186, %s187
      %p191 = pneg %p185
      %p192 = scmp.eq.s32.totalorder %s19, 1
      %p193 = por %p191, %p192
      %p194 = scmp.ne.s32.totalorder %s186, %s189
      %p195 = scmp.eq.s32.totalorder %s19, 0
      %p196 = por %p194, %p195
      %p197 = scmp.ne.s32.totalorder %s186, %s189
      %p198 = scmp.eq.s32.totalorder %s24, 1
      %p199 = por %p197, %p198
      %p200 = scmp.ne.s32.totalorder %s189, %s190
      %p201 = scmp.eq.s32.totalorder %s24, 0
      %p202 = por %p200, %p201
      %p203 = scmp.ne.s32.totalorder %s189, %s190
      %p204 = scmp.eq.s32.totalorder %s25, 1
      %p205 = por %p203, %p204
      %p207 = scmp.ne.s32.totalorder %s190, %s206
      %p208 = scmp.eq.s32.totalorder %s25, 0
      %p209 = por %p207, %p208
      %p210 = scmp.le.s32.totalorder 1, %s19
      %p211 = scmp.lt.s32.totalorder %s19, 3
      %p212 = pnand %p210, %p211
      %p213 = pneg %p212
      // Predicated region
      $region9: #{meta_module_forward.1} parent=5 // pred_check
        _
      $region10: #{meta_module_forward.1} parent=5 // pred_check_branch
        %215 = sbr.rel (%p212) target = $region12
      $region11: #{meta_module_forward.1} parent=5 // pred_region
        %s216 = ssub.s32 %s19, 1
        // Predicated region
        $region13: #{meta_module_forward.1} parent=11 // pred_check
          %p217 = pneg %p92
        $region14: #{meta_module_forward.1} parent=11 // pred_check_branch
          %219 = sbr.rel (%p217) target = $region16
        $region15: #{meta_module_forward.1} parent=11 // pred_region
          _
        $region16: #{meta_module_forward.1} parent=11 // pred_fallthru
          _
        // Predicated region
        $region17: #{meta_module_forward.1} parent=11 // pred_check
          %p220 = pneg %p113
        $region18: #{meta_module_forward.1} parent=11 // pred_check_branch
          %222 = sbr.rel (%p220) target = $region20
        $region19: #{meta_module_forward.1} parent=11 // pred_region
          %s224 = ssub.s32 512, 512
          %225 = vsyncadd [#allocation5], %s224
          %s226 = sshll.u32 [#allocation6], 4
          %s227 = int_to_ptr.vmem [resolvable:$true] %s226
          %232 = dma.hbm_to_vmem [thread:$0]  %s3, 512, %s227, [#allocation5], 128, 128, 8
        $region20: #{meta_module_forward.1} parent=11 // pred_fallthru
          _
        // Predicated region
        $region21: #{meta_module_forward.1} parent=11 // pred_check
          %p233 = pneg %p134
        $region22: #{meta_module_forward.1} parent=11 // pred_check_branch
          %235 = sbr.rel (%p233) target = $region24
        $region23: #{meta_module_forward.1} parent=11 // pred_region
          _
        $region24: #{meta_module_forward.1} parent=11 // pred_fallthru
          _
        // Predicated region
        $region25: #{meta_module_forward.1} parent=11 // pred_check
          %p236 = pneg %p155
        $region26: #{meta_module_forward.1} parent=11 // pred_check_branch
          %238 = sbr.rel (%p236) target = $region28
        $region27: #{meta_module_forward.1} parent=11 // pred_region
          _
        $region28: #{meta_module_forward.1} parent=11 // pred_fallthru
          _
        // Predicated region
        $region29: #{meta_module_forward.1} parent=11 // pred_check
          %p239 = pneg %p176
        $region30: #{meta_module_forward.1} parent=11 // pred_check_branch
          %241 = sbr.rel (%p239) target = $region32
        $region31: #{meta_module_forward.1} parent=11 // pred_region
          _
        $region32: #{meta_module_forward.1} parent=11 // pred_fallthru
          _
      $region12: #{meta_module_forward.1} parent=5 // pred_fallthru
        _
      %p242 = scmp.lt.s32.totalorder %s19, 2
      // Predicated region
      $region33: #{meta_module_forward.1} parent=5 // pred_check
        %p243 = pneg %p242
      $region34: #{meta_module_forward.1} parent=5 // pred_check_branch
        %245 = sbr.rel (%p243) target = $region36
      $region35: #{meta_module_forward.1} parent=5 // pred_region
        // Predicated region
        $region37: #{meta_module_forward.1} parent=35 // pred_check
          %p246 = pneg %p39
        $region38: #{meta_module_forward.1} parent=35 // pred_check_branch
          %248 = sbr.rel (%p246) target = $region40
        $region39: #{meta_module_forward.1} parent=35 // pred_region
          %s249 = sand.u32 %s29, 1
          %s250 = scalar_lea.sflag [#allocation3], %s249
          %s251 = sand.u32 %s29, 1
          %s252 = smul.addr %s251, 64
          %s253 = scalar_lea.vmem [#allocation2], %s252
          %s254 = smul.u32 8, %s19
          %s256 = ssub.s32 1024, 1024
          %257 = vsyncadd %s250, %s256
          %s258 = smul.addr %s254, 128
          %s259 = scalar_lea.hbm %s0, %s258
          %s260 = sshll.u32 %s253, 4
          %s261 = int_to_ptr.vmem [resolvable:$true] %s260
          %266 = dma.hbm_to_vmem [thread:$0]  %s259, 1024, %s261, %s250, 128, 128, 8
        $region40: #{meta_module_forward.1} parent=35 // pred_fallthru
          _
        // Predicated region
        $region41: #{meta_module_forward.1} parent=35 // pred_check
          %p267 = pneg %p65
        $region42: #{meta_module_forward.1} parent=35 // pred_check_branch
          %269 = sbr.rel (%p267) target = $region44
        $region43: #{meta_module_forward.1} parent=35 // pred_region
          %s270 = sand.u32 %s19, 1
          %s271 = scalar_lea.sflag [#allocation5], %s270
          %s272 = sand.u32 %s55, 1
          %s273 = smul.addr %s272, 8
          %s274 = scalar_lea.vmem [#allocation4], %s273
          %s276 = ssub.s32 128, 128
          %277 = vsyncadd %s271, %s276
          %s278 = smul.addr %s19, 128
          %s279 = scalar_lea.hbm %s1, %s278
          %s281 = sshll.u32 %s274, 4
          %s282 = int_to_ptr.vmem [resolvable:$true] %s281
          %284 = dma.hbm_to_vmem [thread:$0]  %s279, 128, %s282, %s271
        $region44: #{meta_module_forward.1} parent=35 // pred_fallthru
          _
      $region36: #{meta_module_forward.1} parent=5 // pred_fallthru
        _
      %p285 = scmp.le.s32.totalorder 1, %s19
      %p286 = scmp.lt.s32.totalorder %s19, 3
      %p287 = pnand %p285, %p286
      %p288 = pneg %p287
      // Predicated region
      $region45: #{meta_module_forward.1} parent=5 // pred_check
        _
      $region46: #{meta_module_forward.1} parent=5 // pred_check_branch
        %290 = sbr.rel (%p287) target = $region48
      $region47: #{meta_module_forward.1} parent=5 // pred_region
        %s291 = ssub.s32 %s19, 1
        %s292 = sand.u32 %s32, 1
        %s293 = scalar_lea.sflag [#allocation3], %s292
        %s294 = sand.u32 %s32, 1
        %s295 = smul.addr %s294, 64
        %s296 = scalar_lea.vmem [#allocation2], %s295
        // Predicated region
        $region49: #{meta_module_forward.1} parent=47 // pred_check
          %p297 = pneg %p45
        $region50: #{meta_module_forward.1} parent=47 // pred_check_branch
          %299 = sbr.rel (%p297) target = $region52
        $region51: #{meta_module_forward.1} parent=47 // pred_region
          %300 = dma.done %s293, 1024
        $region52: #{meta_module_forward.1} parent=47 // pred_fallthru
          _
        %s301 = sand.u32 %s24, 1
        %s302 = scalar_lea.sflag [#allocation5], %s301
        %s303 = sand.u32 %s58, 1
        %s304 = smul.addr %s303, 8
        %s305 = scalar_lea.vmem [#allocation4], %s304
        // Predicated region
        $region53: #{meta_module_forward.1} parent=47 // pred_check
          %p306 = pneg %p71
        $region54: #{meta_module_forward.1} parent=47 // pred_check_branch
          %308 = sbr.rel (%p306) target = $region56
        $region55: #{meta_module_forward.1} parent=47 // pred_region
          %309 = dma.done %s302, 128
        $region56: #{meta_module_forward.1} parent=47 // pred_fallthru
          _
        // Predicated region
        $region57: #{meta_module_forward.1} parent=47 // pred_check
          %p310 = pneg %p113
        $region58: #{meta_module_forward.1} parent=47 // pred_check_branch
          %312 = sbr.rel (%p310) target = $region60
        $region59: #{meta_module_forward.1} parent=47 // pred_region
          %313 = dma.done [#allocation5], 512
        $region60: #{meta_module_forward.1} parent=47 // pred_fallthru
          _
        %s314 = sand.u32 %s32, 1
        %s315 = scalar_lea.sflag [#allocation3], %s314
        %s316 = sand.u32 %s32, 1
        %s317 = smul.addr %s316, 64
        %s318 = scalar_lea.vmem [#allocation2], %s317
        %p319 = pneg %p45
        %p320 = pneg %p42
        %s321 = sand.u32 %s24, 1
        %s322 = scalar_lea.sflag [#allocation5], %s321
        %s323 = sand.u32 %s58, 1
        %s324 = smul.addr %s323, 8
        %s325 = scalar_lea.vmem [#allocation4], %s324
        %p326 = pneg %p71
        %p327 = pneg %p68
        %p328 = pneg %p92
        %p329 = pneg %p89
        %p330 = pneg %p113
        %p331 = pneg %p110
        %p332 = pneg %p134
        %p333 = pneg %p131
        %p334 = pneg %p155
        %p335 = pneg %p152
        %p336 = pneg %p176
        %p337 = pneg %p173
        %p338 = pneg %p202
        %p339 = pneg %p199
        %p340 = scmp.lt.s32.totalorder %s24, 1
        %s341 = scalar_select %p340, %s24, 1
        %s342 = smul.addr %s341, 8
        %s343 = scalar_lea.vmem %s7, %s342
        %s344 = smul.u32 8, %s24
        %p345 = scmp.lt.s32.totalorder %s24, 1
        %s346 = scalar_select %p345, %s24, 1
        %s347 = smul.addr %s346, 8
        %s348 = scalar_lea.vmem %s7, %s347
        %v349 = vld [vmem:[%s296] sm:$0xff]
        %v350 = vld [vmem:[%s296 + $0x8] sm:$0xff]
        %v351 = vld [vmem:[%s296 + $0x10] sm:$0xff]
        %v352 = vld [vmem:[%s296 + $0x18] sm:$0xff]
        %v353 = vld [vmem:[%s296 + $0x20] sm:$0xff]
        %v354 = vld [vmem:[%s296 + $0x28] sm:$0xff]
        %v355 = vld [vmem:[%s296 + $0x30] sm:$0xff]
        %v356 = vld [vmem:[%s296 + $0x38] sm:$0xff]
        %v357 = vld [vmem:[%s305] sm:$0xff]
        %v358 = vld [vmem:[%s2] sm:$0xff]
        %v359 = vld [vmem:[%s2 + $0x8] sm:$0xff]
        %v360 = vld [vmem:[%s2 + $0x10] sm:$0xff]
        %v361 = vld [vmem:[%s2 + $0x18] sm:$0xff]
        %vm362 = vcmask 261120
        %v364 = vsel %vm362, %v349, 0
        %v367 = vsel %vm362, %v350, 0
        %v370 = vsel %vm362, %v351, 0
        %v373 = vsel %vm362, %v352, 0
        %v376 = vsel %vm362, %v353, 0
        %v379 = vsel %vm362, %v354, 0
        %v382 = vsel %vm362, %v355, 0
        %v385 = vsel %vm362, %v356, 0
        %387 = vmatprep.subr.mxu0 0.0
        %388 = vmatpush1.msra.mxu0 0.0
        %389 = vmatprep.subr.mxu0 0.0
        %390 = vmatpush1.msra.mxu0 0.0
        %391 = vmatprep.subr.mxu0 0.0
        %392 = vmatpush1.msra.mxu0 0.0
        %393 = vmatprep.subr.mxu0 0.0
        %394 = vmatpush1.msra.mxu0 0.0
        %395 = vmatprep.subr.mxu0 0.0
        %396 = vmatpush1.msra.mxu0 0.0
        %397 = vmatprep.subr.mxu0 0.0
        %398 = vmatpush1.msra.mxu0 0.0
        %399 = vmatprep.subr.mxu0 0.0
        %400 = vmatpush1.msra.mxu0 0.0
        %401 = vmatprep.subr.mxu0 0.0
        %402 = vmatpush1.msra.mxu0 0.0
        %403 = vmatprep.subr.mxu0 0.0
        %404 = vmatpush1.msra.mxu0 0.0
        %405 = vmatprep.subr.mxu0 0.0
        %406 = vmatpush1.msra.mxu0 0.0
        %407 = vmatprep.subr.mxu0 0.0
        %408 = vmatpush1.msra.mxu0 0.0
        %409 = vmatprep.subr.mxu0 0.0
        %410 = vmatpush1.msra.mxu0 0.0
        %411 = vmatprep.subr.mxu0 0.0
        %412 = vmatpush1.msra.mxu0 %v361
        %413 = vmatprep.subr.mxu0 0.0
        %414 = vmatpush1.msra.mxu0 %v360
        %415 = vmatprep.subr.mxu0 0.0
        %416 = vmatpush1.msra.mxu0 %v359
        %417 = vmatprep.subr.mxu0 0.0
        %418 = vmatpush1.msra.mxu0 %v358
        %419 = vmatprep.subr.mxu0 0.0
        %420 = vmatpush2.msra.mxu0 0.0
        %421 = vmatprep.subr.mxu0 0.0
        %422 = vmatpush2.msra.mxu0 0.0
        %423 = vmatprep.subr.mxu0 0.0
        %424 = vmatpush2.msra.mxu0 0.0
        %425 = vmatprep.subr.mxu0 0.0
        %426 = vmatpush2.msra.mxu0 0.0
        %427 = vmatprep.subr.mxu0 0.0
        %428 = vmatpush2.msra.mxu0 0.0
        %429 = vmatprep.subr.mxu0 0.0
        %430 = vmatpush2.msra.mxu0 0.0
        %431 = vmatprep.subr.mxu0 0.0
        %432 = vmatpush2.msra.mxu0 0.0
        %433 = vmatprep.subr.mxu0 0.0
        %434 = vmatpush2.msra.mxu0 0.0
        %435 = vmatprep.subr.mxu0 0.0
        %436 = vmatpush2.msra.mxu0 0.0
        %437 = vmatprep.subr.mxu0 0.0
        %438 = vmatpush2.msra.mxu0 0.0
        %439 = vmatprep.subr.mxu0 0.0
        %440 = vmatpush2.msra.mxu0 0.0
        %441 = vmatprep.subr.mxu0 0.0
        %442 = vmatpush2.msra.mxu0 0.0
        %443 = vmatprep.subr.mxu0 0.0
        %444 = vmatpush2.msra.mxu0 0.0
        %445 = vmatprep.subr.mxu0 0.0
        %446 = vmatpush2.msra.mxu0 0.0
        %447 = vmatprep.subr.mxu0 0.0
        %448 = vmatpush2.msra.mxu0 0.0
        %449 = vmatprep.subr.mxu0 0.0
        %450 = vmatpush2.msra.mxu0 0.0
        %451 = vmatprep.mubr.f32.mxu0 0.0
        %452 = vmatmul.mubr.f32.gmra.mxu0 %v364
        %v453 = vpop.f32.mrf.mxu0
        %v454 = vadd.f32 0.0, %v453
        %v455 = vpop.f32.mrf.mxu0
        %456 = vmatprep.mubr.f32.mxu0 0.0
        %457 = vmatmul.mubr.f32.gmra.mxu0 %v367
        %v458 = vpop.f32.mrf.mxu0
        %v459 = vadd.f32 0.0, %v458
        %v460 = vpop.f32.mrf.mxu0
        %461 = vmatprep.mubr.f32.mxu0 0.0
        %462 = vmatmul.mubr.f32.gmra.mxu0 %v370
        %v463 = vpop.f32.mrf.mxu0
        %v464 = vadd.f32 0.0, %v463
        %v465 = vpop.f32.mrf.mxu0
        %466 = vmatprep.mubr.f32.mxu0 0.0
        %467 = vmatmul.mubr.f32.gmra.mxu0 %v373
        %v468 = vpop.f32.mrf.mxu0
        %v469 = vadd.f32 0.0, %v468
        %v470 = vpop.f32.mrf.mxu0
        %471 = vmatprep.mubr.f32.mxu0 0.0
        %472 = vmatmul.mubr.f32.gmra.mxu0 %v376
        %v473 = vpop.f32.mrf.mxu0
        %v474 = vadd.f32 0.0, %v473
        %v475 = vpop.f32.mrf.mxu0
        %476 = vmatprep.mubr.f32.mxu0 0.0
        %477 = vmatmul.mubr.f32.gmra.mxu0 %v379
        %v478 = vpop.f32.mrf.mxu0
        %v479 = vadd.f32 0.0, %v478
        %v480 = vpop.f32.mrf.mxu0
        %481 = vmatprep.mubr.f32.mxu0 0.0
        %482 = vmatmul.mubr.f32.gmra.mxu0 %v382
        %v483 = vpop.f32.mrf.mxu0
        %v484 = vadd.f32 0.0, %v483
        %v485 = vpop.f32.mrf.mxu0
        %486 = vmatprep.mubr.f32.mxu0 0.0
        %487 = vmatmul.mubr.f32.gmra.mxu0 %v385
        %v488 = vpop.f32.mrf.mxu0
        %v489 = vadd.f32 0.0, %v488
        %v490 = vpop.f32.mrf.mxu0
        %491 = vdwg.mxu0
        %v492 = vld [vmem:[#allocation6] sm:$0xff]
        %v493 = vld [vmem:[#allocation6 + $0x8] sm:$0xff]
        %v494 = vld [vmem:[#allocation6 + $0x10] sm:$0xff]
        %v495 = vld [vmem:[#allocation6 + $0x18] sm:$0xff]
        %v497 = vsel %vm362, %v357, 0
        %499 = vmatprep.subr.mxu0 0.0
        %500 = vmatpush1.msra.mxu0 0.0
        %501 = vmatprep.subr.mxu0 0.0
        %502 = vmatpush1.msra.mxu0 0.0
        %503 = vmatprep.subr.mxu0 0.0
        %504 = vmatpush1.msra.mxu0 0.0
        %505 = vmatprep.subr.mxu0 0.0
        %506 = vmatpush1.msra.mxu0 0.0
        %507 = vmatprep.subr.mxu0 0.0
        %508 = vmatpush1.msra.mxu0 0.0
        %509 = vmatprep.subr.mxu0 0.0
        %510 = vmatpush1.msra.mxu0 0.0
        %511 = vmatprep.subr.mxu0 0.0
        %512 = vmatpush1.msra.mxu0 0.0
        %513 = vmatprep.subr.mxu0 0.0
        %514 = vmatpush1.msra.mxu0 0.0
        %515 = vmatprep.subr.mxu0 0.0
        %516 = vmatpush1.msra.mxu0 0.0
        %517 = vmatprep.subr.mxu0 0.0
        %518 = vmatpush1.msra.mxu0 0.0
        %519 = vmatprep.subr.mxu0 0.0
        %520 = vmatpush1.msra.mxu0 0.0
        %521 = vmatprep.subr.mxu0 0.0
        %522 = vmatpush1.msra.mxu0 0.0
        %523 = vmatprep.subr.mxu0 0.0
        %524 = vmatpush1.msra.mxu0 %v495
        %525 = vmatprep.subr.mxu0 0.0
        %526 = vmatpush1.msra.mxu0 %v494
        %527 = vmatprep.subr.mxu0 0.0
        %528 = vmatpush1.msra.mxu0 %v493
        %529 = vmatprep.subr.mxu0 0.0
        %530 = vmatpush1.msra.mxu0 %v492
        %531 = vmatprep.subr.mxu0 0.0
        %532 = vmatpush2.msra.mxu0 0.0
        %533 = vmatprep.subr.mxu0 0.0
        %534 = vmatpush2.msra.mxu0 0.0
        %535 = vmatprep.subr.mxu0 0.0
        %536 = vmatpush2.msra.mxu0 0.0
        %537 = vmatprep.subr.mxu0 0.0
        %538 = vmatpush2.msra.mxu0 0.0
        %539 = vmatprep.subr.mxu0 0.0
        %540 = vmatpush2.msra.mxu0 0.0
        %541 = vmatprep.subr.mxu0 0.0
        %542 = vmatpush2.msra.mxu0 0.0
        %543 = vmatprep.subr.mxu0 0.0
        %544 = vmatpush2.msra.mxu0 0.0
        %545 = vmatprep.subr.mxu0 0.0
        %546 = vmatpush2.msra.mxu0 0.0
        %547 = vmatprep.subr.mxu0 0.0
        %548 = vmatpush2.msra.mxu0 0.0
        %549 = vmatprep.subr.mxu0 0.0
        %550 = vmatpush2.msra.mxu0 0.0
        %551 = vmatprep.subr.mxu0 0.0
        %552 = vmatpush2.msra.mxu0 0.0
        %553 = vmatprep.subr.mxu0 0.0
        %554 = vmatpush2.msra.mxu0 0.0
        %555 = vmatprep.subr.mxu0 0.0
        %556 = vmatpush2.msra.mxu0 0.0
        %557 = vmatprep.subr.mxu0 0.0
        %558 = vmatpush2.msra.mxu0 0.0
        %559 = vmatprep.subr.mxu0 0.0
        %560 = vmatpush2.msra.mxu0 0.0
        %561 = vmatprep.subr.mxu0 0.0
        %562 = vmatpush2.msra.mxu0 0.0
        %563 = vmatprep.mubr.f32.mxu0 0.0
        %564 = vmatmul.mubr.f32.gmra.mxu0 %v497
        %v565 = vpop.f32.mrf.mxu0
        %v566 = vadd.f32 0.0, %v565
        %v567 = vpop.f32.mrf.mxu0
        %568 = vdwg.mxu0
        %v570 = vcombine.high %v566, %v566
        %v572 = vunpack.c.l.s4 1966171168
        %v573 = vunpack.c.0.s8 %v572
        %v574 = vlaneseq
        %v575 = vshrl.u32 %v574, 7
        %v576 = vsub.s32 %v573, %v575
        %v577 = vrot.slane %v566, %v576
        %v579 = vunpack.c.l.s4 1966171168
        %v580 = vunpack.c.0.s8 %v579
        %v581 = vlaneseq
        %v582 = vshrl.u32 %v581, 7
        %v583 = vsub.s32 %v580, %v582
        %v584 = vrot.slane %v570, %v583
        %v585 = vcombine.high %v577, %v577
        %v586 = vcombine.high %v584, %v584
        %v588 = vunpack.c.l.s4 1966171168
        %v589 = vunpack.c.0.s8 %v588
        %v590 = vlaneseq
        %v591 = vshrl.u32 %v590, 7
        %v592 = vsub.s32 %v589, %v591
        %v593 = vrot.slane %v577, %v592
        %v595 = vunpack.c.l.s4 1966171168
        %v596 = vunpack.c.0.s8 %v595
        %v597 = vlaneseq
        %v598 = vshrl.u32 %v597, 7
        %v599 = vsub.s32 %v596, %v598
        %v600 = vrot.slane %v584, %v599
        %v602 = vunpack.c.l.s4 1966171168
        %v603 = vunpack.c.0.s8 %v602
        %v604 = vlaneseq
        %v605 = vshrl.u32 %v604, 7
        %v606 = vsub.s32 %v603, %v605
        %v607 = vrot.slane %v585, %v606
        %v609 = vunpack.c.l.s4 1966171168
        %v610 = vunpack.c.0.s8 %v609
        %v611 = vlaneseq
        %v612 = vshrl.u32 %v611, 7
        %v613 = vsub.s32 %v610, %v612
        %v614 = vrot.slane %v586, %v613
        %v615 = vcombine.high %v593, %v593
        %v616 = vcombine.high %v600, %v600
        %v617 = vcombine.high %v607, %v607
        %v618 = vcombine.high %v614, %v614
        %v619 = vlaneseq
        %v620 = vshrl.u32 %v619, 7
        %v621 = vsub.s32 0, %v620
        %v622 = vrot.slane %v593, %v621
        %v623 = vlaneseq
        %v624 = vshrl.u32 %v623, 7
        %v625 = vsub.s32 0, %v624
        %v626 = vrot.slane %v607, %v625
        %v627 = vlaneseq
        %v628 = vshrl.u32 %v627, 7
        %v629 = vsub.s32 0, %v628
        %v630 = vrot.slane %v615, %v629
        %v631 = vlaneseq
        %v632 = vshrl.u32 %v631, 7
        %v633 = vsub.s32 0, %v632
        %v634 = vrot.slane %v617, %v633
        %v635 = vlaneseq
        %v636 = vshrl.u32 %v635, 7
        %v637 = vsub.s32 0, %v636
        %v638 = vrot.slane %v600, %v637
        %v639 = vlaneseq
        %v640 = vshrl.u32 %v639, 7
        %v641 = vsub.s32 0, %v640
        %v642 = vrot.slane %v614, %v641
        %v643 = vlaneseq
        %v644 = vshrl.u32 %v643, 7
        %v645 = vsub.s32 0, %v644
        %v646 = vrot.slane %v616, %v645
        %v647 = vlaneseq
        %v648 = vshrl.u32 %v647, 7
        %v649 = vsub.s32 0, %v648
        %v650 = vrot.slane %v618, %v649
        %v659 = vadd.f32 %v454, %v622
        %v660 = vadd.f32 %v459, %v626
        %v661 = vadd.f32 %v464, %v630
        %v662 = vadd.f32 %v469, %v634
        %v663 = vadd.f32 %v474, %v638
        %v664 = vadd.f32 %v479, %v642
        %v665 = vadd.f32 %v484, %v646
        %v666 = vadd.f32 %v489, %v650
        %v667 = vtanh.pop %v659
        %v668 = vtanh.pop %v660
        %v669 = vtanh.pop %v661
        %v670 = vtanh.pop %v662
        %v671 = vtanh.pop %v663
        %v672 = vtanh.pop %v664
        %v673 = vtanh.pop %v665
        %v674 = vtanh.pop %v666
        %v675 = vld [vmem:[%s4] sm:$0x1]
        %v677 = vsel %vm362, %v675, 0
        %v680 = vsel %vm362, %v667, 0
        %682 = vmatprep.subr.mxu0 0.0
        %683 = vmatpush1.xpose.msra.mxu0 0.0
        %684 = vmatprep.subr.mxu0 0.0
        %685 = vmatpush1.xpose.msra.mxu0 0.0
        %686 = vmatprep.subr.mxu0 0.0
        %687 = vmatpush1.xpose.msra.mxu0 0.0
        %688 = vmatprep.subr.mxu0 0.0
        %689 = vmatpush1.xpose.msra.mxu0 0.0
        %690 = vmatprep.subr.mxu0 0.0
        %691 = vmatpush1.xpose.msra.mxu0 0.0
        %692 = vmatprep.subr.mxu0 0.0
        %693 = vmatpush1.xpose.msra.mxu0 0.0
        %694 = vmatprep.subr.mxu0 0.0
        %695 = vmatpush1.xpose.msra.mxu0 0.0
        %696 = vmatprep.subr.mxu0 0.0
        %697 = vmatpush1.xpose.msra.mxu0 0.0
        %698 = vmatprep.subr.mxu0 0.0
        %699 = vmatpush1.xpose.msra.mxu0 0.0
        %700 = vmatprep.subr.mxu0 0.0
        %701 = vmatpush1.xpose.msra.mxu0 0.0
        %702 = vmatprep.subr.mxu0 0.0
        %703 = vmatpush1.xpose.msra.mxu0 0.0
        %704 = vmatprep.subr.mxu0 0.0
        %705 = vmatpush1.xpose.msra.mxu0 0.0
        %706 = vmatprep.subr.mxu0 0.0
        %707 = vmatpush1.xpose.msra.mxu0 0.0
        %708 = vmatprep.subr.mxu0 0.0
        %709 = vmatpush1.xpose.msra.mxu0 0.0
        %710 = vmatprep.subr.mxu0 0.0
        %711 = vmatpush1.xpose.msra.mxu0 0.0
        %712 = vmatprep.subr.mxu0 0.0
        %713 = vmatpush1.xpose.msra.mxu0 %v680
        %714 = vmatprep.subr.mxu0 0.0
        %715 = vmatpush2.xpose.msra.mxu0 0.0
        %716 = vmatprep.subr.mxu0 0.0
        %717 = vmatpush2.xpose.msra.mxu0 0.0
        %718 = vmatprep.subr.mxu0 0.0
        %719 = vmatpush2.xpose.msra.mxu0 0.0
        %720 = vmatprep.subr.mxu0 0.0
        %721 = vmatpush2.xpose.msra.mxu0 0.0
        %722 = vmatprep.subr.mxu0 0.0
        %723 = vmatpush2.xpose.msra.mxu0 0.0
        %724 = vmatprep.subr.mxu0 0.0
        %725 = vmatpush2.xpose.msra.mxu0 0.0
        %726 = vmatprep.subr.mxu0 0.0
        %727 = vmatpush2.xpose.msra.mxu0 0.0
        %728 = vmatprep.subr.mxu0 0.0
        %729 = vmatpush2.xpose.msra.mxu0 0.0
        %730 = vmatprep.subr.mxu0 0.0
        %731 = vmatpush2.xpose.msra.mxu0 0.0
        %732 = vmatprep.subr.mxu0 0.0
        %733 = vmatpush2.xpose.msra.mxu0 0.0
        %734 = vmatprep.subr.mxu0 0.0
        %735 = vmatpush2.xpose.msra.mxu0 0.0
        %736 = vmatprep.subr.mxu0 0.0
        %737 = vmatpush2.xpose.msra.mxu0 0.0
        %738 = vmatprep.subr.mxu0 0.0
        %739 = vmatpush2.xpose.msra.mxu0 0.0
        %740 = vmatprep.subr.mxu0 0.0
        %741 = vmatpush2.xpose.msra.mxu0 0.0
        %742 = vmatprep.subr.mxu0 0.0
        %743 = vmatpush2.xpose.msra.mxu0 0.0
        %744 = vmatprep.subr.mxu0 0.0
        %745 = vmatpush2.xpose.msra.mxu0 0.0
        %746 = vmatprep.mubr.f32.mxu0 0.0
        %747 = vmatmul.mubr.f32.gmra.mxu0 %v677
        %v748 = vpop.f32.mrf.mxu0
        %v749 = vadd.f32 0.0, %v748
        %v750 = vpop.f32.mrf.mxu0
        %751 = vdwg.mxu0
        %v753 = vsel %vm362, %v668, 0
        %755 = vmatprep.subr.mxu0 0.0
        %756 = vmatpush1.xpose.msra.mxu0 0.0
        %757 = vmatprep.subr.mxu0 0.0
        %758 = vmatpush1.xpose.msra.mxu0 0.0
        %759 = vmatprep.subr.mxu0 0.0
        %760 = vmatpush1.xpose.msra.mxu0 0.0
        %761 = vmatprep.subr.mxu0 0.0
        %762 = vmatpush1.xpose.msra.mxu0 0.0
        %763 = vmatprep.subr.mxu0 0.0
        %764 = vmatpush1.xpose.msra.mxu0 0.0
        %765 = vmatprep.subr.mxu0 0.0
        %766 = vmatpush1.xpose.msra.mxu0 0.0
        %767 = vmatprep.subr.mxu0 0.0
        %768 = vmatpush1.xpose.msra.mxu0 0.0
        %769 = vmatprep.subr.mxu0 0.0
        %770 = vmatpush1.xpose.msra.mxu0 0.0
        %771 = vmatprep.subr.mxu0 0.0
        %772 = vmatpush1.xpose.msra.mxu0 0.0
        %773 = vmatprep.subr.mxu0 0.0
        %774 = vmatpush1.xpose.msra.mxu0 0.0
        %775 = vmatprep.subr.mxu0 0.0
        %776 = vmatpush1.xpose.msra.mxu0 0.0
        %777 = vmatprep.subr.mxu0 0.0
        %778 = vmatpush1.xpose.msra.mxu0 0.0
        %779 = vmatprep.subr.mxu0 0.0
        %780 = vmatpush1.xpose.msra.mxu0 0.0
        %781 = vmatprep.subr.mxu0 0.0
        %782 = vmatpush1.xpose.msra.mxu0 0.0
        %783 = vmatprep.subr.mxu0 0.0
        %784 = vmatpush1.xpose.msra.mxu0 0.0
        %785 = vmatprep.subr.mxu0 0.0
        %786 = vmatpush1.xpose.msra.mxu0 %v753
        %787 = vmatprep.subr.mxu0 0.0
        %788 = vmatpush2.xpose.msra.mxu0 0.0
        %789 = vmatprep.subr.mxu0 0.0
        %790 = vmatpush2.xpose.msra.mxu0 0.0
        %791 = vmatprep.subr.mxu0 0.0
        %792 = vmatpush2.xpose.msra.mxu0 0.0
        %793 = vmatprep.subr.mxu0 0.0
        %794 = vmatpush2.xpose.msra.mxu0 0.0
        %795 = vmatprep.subr.mxu0 0.0
        %796 = vmatpush2.xpose.msra.mxu0 0.0
        %797 = vmatprep.subr.mxu0 0.0
        %798 = vmatpush2.xpose.msra.mxu0 0.0
        %799 = vmatprep.subr.mxu0 0.0
        %800 = vmatpush2.xpose.msra.mxu0 0.0
        %801 = vmatprep.subr.mxu0 0.0
        %802 = vmatpush2.xpose.msra.mxu0 0.0
        %803 = vmatprep.subr.mxu0 0.0
        %804 = vmatpush2.xpose.msra.mxu0 0.0
        %805 = vmatprep.subr.mxu0 0.0
        %806 = vmatpush2.xpose.msra.mxu0 0.0
        %807 = vmatprep.subr.mxu0 0.0
        %808 = vmatpush2.xpose.msra.mxu0 0.0
        %809 = vmatprep.subr.mxu0 0.0
        %810 = vmatpush2.xpose.msra.mxu0 0.0
        %811 = vmatprep.subr.mxu0 0.0
        %812 = vmatpush2.xpose.msra.mxu0 0.0
        %813 = vmatprep.subr.mxu0 0.0
        %814 = vmatpush2.xpose.msra.mxu0 0.0
        %815 = vmatprep.subr.mxu0 0.0
        %816 = vmatpush2.xpose.msra.mxu0 0.0
        %817 = vmatprep.subr.mxu0 0.0
        %818 = vmatpush2.xpose.msra.mxu0 0.0
        %819 = vmatprep.mubr.f32.mxu0 0.0
        %820 = vmatmul.mubr.f32.gmra.mxu0 %v677
        %v821 = vpop.f32.mrf.mxu0
        %v822 = vadd.f32 0.0, %v821
        %v823 = vpop.f32.mrf.mxu0
        %824 = vdwg.mxu0
        %v826 = vsel %vm362, %v669, 0
        %828 = vmatprep.subr.mxu0 0.0
        %829 = vmatpush1.xpose.msra.mxu0 0.0
        %830 = vmatprep.subr.mxu0 0.0
        %831 = vmatpush1.xpose.msra.mxu0 0.0
        %832 = vmatprep.subr.mxu0 0.0
        %833 = vmatpush1.xpose.msra.mxu0 0.0
        %834 = vmatprep.subr.mxu0 0.0
        %835 = vmatpush1.xpose.msra.mxu0 0.0
        %836 = vmatprep.subr.mxu0 0.0
        %837 = vmatpush1.xpose.msra.mxu0 0.0
        %838 = vmatprep.subr.mxu0 0.0
        %839 = vmatpush1.xpose.msra.mxu0 0.0
        %840 = vmatprep.subr.mxu0 0.0
        %841 = vmatpush1.xpose.msra.mxu0 0.0
        %842 = vmatprep.subr.mxu0 0.0
        %843 = vmatpush1.xpose.msra.mxu0 0.0
        %844 = vmatprep.subr.mxu0 0.0
        %845 = vmatpush1.xpose.msra.mxu0 0.0
        %846 = vmatprep.subr.mxu0 0.0
        %847 = vmatpush1.xpose.msra.mxu0 0.0
        %848 = vmatprep.subr.mxu0 0.0
        %849 = vmatpush1.xpose.msra.mxu0 0.0
        %850 = vmatprep.subr.mxu0 0.0
        %851 = vmatpush1.xpose.msra.mxu0 0.0
        %852 = vmatprep.subr.mxu0 0.0
        %853 = vmatpush1.xpose.msra.mxu0 0.0
        %854 = vmatprep.subr.mxu0 0.0
        %855 = vmatpush1.xpose.msra.mxu0 0.0
        %856 = vmatprep.subr.mxu0 0.0
        %857 = vmatpush1.xpose.msra.mxu0 0.0
        %858 = vmatprep.subr.mxu0 0.0
        %859 = vmatpush1.xpose.msra.mxu0 %v826
        %860 = vmatprep.subr.mxu0 0.0
        %861 = vmatpush2.xpose.msra.mxu0 0.0
        %862 = vmatprep.subr.mxu0 0.0
        %863 = vmatpush2.xpose.msra.mxu0 0.0
        %864 = vmatprep.subr.mxu0 0.0
        %865 = vmatpush2.xpose.msra.mxu0 0.0
        %866 = vmatprep.subr.mxu0 0.0
        %867 = vmatpush2.xpose.msra.mxu0 0.0
        %868 = vmatprep.subr.mxu0 0.0
        %869 = vmatpush2.xpose.msra.mxu0 0.0
        %870 = vmatprep.subr.mxu0 0.0
        %871 = vmatpush2.xpose.msra.mxu0 0.0
        %872 = vmatprep.subr.mxu0 0.0
        %873 = vmatpush2.xpose.msra.mxu0 0.0
        %874 = vmatprep.subr.mxu0 0.0
        %875 = vmatpush2.xpose.msra.mxu0 0.0
        %876 = vmatprep.subr.mxu0 0.0
        %877 = vmatpush2.xpose.msra.mxu0 0.0
        %878 = vmatprep.subr.mxu0 0.0
        %879 = vmatpush2.xpose.msra.mxu0 0.0
        %880 = vmatprep.subr.mxu0 0.0
        %881 = vmatpush2.xpose.msra.mxu0 0.0
        %882 = vmatprep.subr.mxu0 0.0
        %883 = vmatpush2.xpose.msra.mxu0 0.0
        %884 = vmatprep.subr.mxu0 0.0
        %885 = vmatpush2.xpose.msra.mxu0 0.0
        %886 = vmatprep.subr.mxu0 0.0
        %887 = vmatpush2.xpose.msra.mxu0 0.0
        %888 = vmatprep.subr.mxu0 0.0
        %889 = vmatpush2.xpose.msra.mxu0 0.0
        %890 = vmatprep.subr.mxu0 0.0
        %891 = vmatpush2.xpose.msra.mxu0 0.0
        %892 = vmatprep.mubr.f32.mxu0 0.0
        %893 = vmatmul.mubr.f32.gmra.mxu0 %v677
        %v894 = vpop.f32.mrf.mxu0
        %v895 = vadd.f32 0.0, %v894
        %v896 = vpop.f32.mrf.mxu0
        %897 = vdwg.mxu0
        %v899 = vsel %vm362, %v670, 0
        %901 = vmatprep.subr.mxu0 0.0
        %902 = vmatpush1.xpose.msra.mxu0 0.0
        %903 = vmatprep.subr.mxu0 0.0
        %904 = vmatpush1.xpose.msra.mxu0 0.0
        %905 = vmatprep.subr.mxu0 0.0
        %906 = vmatpush1.xpose.msra.mxu0 0.0
        %907 = vmatprep.subr.mxu0 0.0
        %908 = vmatpush1.xpose.msra.mxu0 0.0
        %909 = vmatprep.subr.mxu0 0.0
        %910 = vmatpush1.xpose.msra.mxu0 0.0
        %911 = vmatprep.subr.mxu0 0.0
        %912 = vmatpush1.xpose.msra.mxu0 0.0
        %913 = vmatprep.subr.mxu0 0.0
        %914 = vmatpush1.xpose.msra.mxu0 0.0
        %915 = vmatprep.subr.mxu0 0.0
        %916 = vmatpush1.xpose.msra.mxu0 0.0
        %917 = vmatprep.subr.mxu0 0.0
        %918 = vmatpush1.xpose.msra.mxu0 0.0
        %919 = vmatprep.subr.mxu0 0.0
        %920 = vmatpush1.xpose.msra.mxu0 0.0
        %921 = vmatprep.subr.mxu0 0.0
        %922 = vmatpush1.xpose.msra.mxu0 0.0
        %923 = vmatprep.subr.mxu0 0.0
        %924 = vmatpush1.xpose.msra.mxu0 0.0
        %925 = vmatprep.subr.mxu0 0.0
        %926 = vmatpush1.xpose.msra.mxu0 0.0
        %927 = vmatprep.subr.mxu0 0.0
        %928 = vmatpush1.xpose.msra.mxu0 0.0
        %929 = vmatprep.subr.mxu0 0.0
        %930 = vmatpush1.xpose.msra.mxu0 0.0
        %931 = vmatprep.subr.mxu0 0.0
        %932 = vmatpush1.xpose.msra.mxu0 %v899
        %933 = vmatprep.subr.mxu0 0.0
        %934 = vmatpush2.xpose.msra.mxu0 0.0
        %935 = vmatprep.subr.mxu0 0.0
        %936 = vmatpush2.xpose.msra.mxu0 0.0
        %937 = vmatprep.subr.mxu0 0.0
        %938 = vmatpush2.xpose.msra.mxu0 0.0
        %939 = vmatprep.subr.mxu0 0.0
        %940 = vmatpush2.xpose.msra.mxu0 0.0
        %941 = vmatprep.subr.mxu0 0.0
        %942 = vmatpush2.xpose.msra.mxu0 0.0
        %943 = vmatprep.subr.mxu0 0.0
        %944 = vmatpush2.xpose.msra.mxu0 0.0
        %945 = vmatprep.subr.mxu0 0.0
        %946 = vmatpush2.xpose.msra.mxu0 0.0
        %947 = vmatprep.subr.mxu0 0.0
        %948 = vmatpush2.xpose.msra.mxu0 0.0
        %949 = vmatprep.subr.mxu0 0.0
        %950 = vmatpush2.xpose.msra.mxu0 0.0
        %951 = vmatprep.subr.mxu0 0.0
        %952 = vmatpush2.xpose.msra.mxu0 0.0
        %953 = vmatprep.subr.mxu0 0.0
        %954 = vmatpush2.xpose.msra.mxu0 0.0
        %955 = vmatprep.subr.mxu0 0.0
        %956 = vmatpush2.xpose.msra.mxu0 0.0
        %957 = vmatprep.subr.mxu0 0.0
        %958 = vmatpush2.xpose.msra.mxu0 0.0
        %959 = vmatprep.subr.mxu0 0.0
        %960 = vmatpush2.xpose.msra.mxu0 0.0
        %961 = vmatprep.subr.mxu0 0.0
        %962 = vmatpush2.xpose.msra.mxu0 0.0
        %963 = vmatprep.subr.mxu0 0.0
        %964 = vmatpush2.xpose.msra.mxu0 0.0
        %965 = vmatprep.mubr.f32.mxu0 0.0
        %966 = vmatmul.mubr.f32.gmra.mxu0 %v677
        %v967 = vpop.f32.mrf.mxu0
        %v968 = vadd.f32 0.0, %v967
        %v969 = vpop.f32.mrf.mxu0
        %970 = vdwg.mxu0
        %v972 = vsel %vm362, %v671, 0
        %974 = vmatprep.subr.mxu0 0.0
        %975 = vmatpush1.xpose.msra.mxu0 0.0
        %976 = vmatprep.subr.mxu0 0.0
        %977 = vmatpush1.xpose.msra.mxu0 0.0
        %978 = vmatprep.subr.mxu0 0.0
        %979 = vmatpush1.xpose.msra.mxu0 0.0
        %980 = vmatprep.subr.mxu0 0.0
        %981 = vmatpush1.xpose.msra.mxu0 0.0
        %982 = vmatprep.subr.mxu0 0.0
        %983 = vmatpush1.xpose.msra.mxu0 0.0
        %984 = vmatprep.subr.mxu0 0.0
        %985 = vmatpush1.xpose.msra.mxu0 0.0
        %986 = vmatprep.subr.mxu0 0.0
        %987 = vmatpush1.xpose.msra.mxu0 0.0
        %988 = vmatprep.subr.mxu0 0.0
        %989 = vmatpush1.xpose.msra.mxu0 0.0
        %990 = vmatprep.subr.mxu0 0.0
        %991 = vmatpush1.xpose.msra.mxu0 0.0
        %992 = vmatprep.subr.mxu0 0.0
        %993 = vmatpush1.xpose.msra.mxu0 0.0
        %994 = vmatprep.subr.mxu0 0.0
        %995 = vmatpush1.xpose.msra.mxu0 0.0
        %996 = vmatprep.subr.mxu0 0.0
        %997 = vmatpush1.xpose.msra.mxu0 0.0
        %998 = vmatprep.subr.mxu0 0.0
        %999 = vmatpush1.xpose.msra.mxu0 0.0
        %1000 = vmatprep.subr.mxu0 0.0
        %1001 = vmatpush1.xpose.msra.mxu0 0.0
        %1002 = vmatprep.subr.mxu0 0.0
        %1003 = vmatpush1.xpose.msra.mxu0 0.0
        %1004 = vmatprep.subr.mxu0 0.0
        %1005 = vmatpush1.xpose.msra.mxu0 %v972
        %1006 = vmatprep.subr.mxu0 0.0
        %1007 = vmatpush2.xpose.msra.mxu0 0.0
        %1008 = vmatprep.subr.mxu0 0.0
        %1009 = vmatpush2.xpose.msra.mxu0 0.0
        %1010 = vmatprep.subr.mxu0 0.0
        %1011 = vmatpush2.xpose.msra.mxu0 0.0
        %1012 = vmatprep.subr.mxu0 0.0
        %1013 = vmatpush2.xpose.msra.mxu0 0.0
        %1014 = vmatprep.subr.mxu0 0.0
        %1015 = vmatpush2.xpose.msra.mxu0 0.0
        %1016 = vmatprep.subr.mxu0 0.0
        %1017 = vmatpush2.xpose.msra.mxu0 0.0
        %1018 = vmatprep.subr.mxu0 0.0
        %1019 = vmatpush2.xpose.msra.mxu0 0.0
        %1020 = vmatprep.subr.mxu0 0.0
        %1021 = vmatpush2.xpose.msra.mxu0 0.0
        %1022 = vmatprep.subr.mxu0 0.0
        %1023 = vmatpush2.xpose.msra.mxu0 0.0
        %1024 = vmatprep.subr.mxu0 0.0
        %1025 = vmatpush2.xpose.msra.mxu0 0.0
        %1026 = vmatprep.subr.mxu0 0.0
        %1027 = vmatpush2.xpose.msra.mxu0 0.0
        %1028 = vmatprep.subr.mxu0 0.0
        %1029 = vmatpush2.xpose.msra.mxu0 0.0
        %1030 = vmatprep.subr.mxu0 0.0
        %1031 = vmatpush2.xpose.msra.mxu0 0.0
        %1032 = vmatprep.subr.mxu0 0.0
        %1033 = vmatpush2.xpose.msra.mxu0 0.0
        %1034 = vmatprep.subr.mxu0 0.0
        %1035 = vmatpush2.xpose.msra.mxu0 0.0
        %1036 = vmatprep.subr.mxu0 0.0
        %1037 = vmatpush2.xpose.msra.mxu0 0.0
        %1038 = vmatprep.mubr.f32.mxu0 0.0
        %1039 = vmatmul.mubr.f32.gmra.mxu0 %v677
        %v1040 = vpop.f32.mrf.mxu0
        %v1041 = vadd.f32 0.0, %v1040
        %v1042 = vpop.f32.mrf.mxu0
        %1043 = vdwg.mxu0
        %v1045 = vsel %vm362, %v672, 0
        %1047 = vmatprep.subr.mxu0 0.0
        %1048 = vmatpush1.xpose.msra.mxu0 0.0
        %1049 = vmatprep.subr.mxu0 0.0
        %1050 = vmatpush1.xpose.msra.mxu0 0.0
        %1051 = vmatprep.subr.mxu0 0.0
        %1052 = vmatpush1.xpose.msra.mxu0 0.0
        %1053 = vmatprep.subr.mxu0 0.0
        %1054 = vmatpush1.xpose.msra.mxu0 0.0
        %1055 = vmatprep.subr.mxu0 0.0
        %1056 = vmatpush1.xpose.msra.mxu0 0.0
        %1057 = vmatprep.subr.mxu0 0.0
        %1058 = vmatpush1.xpose.msra.mxu0 0.0
        %1059 = vmatprep.subr.mxu0 0.0
        %1060 = vmatpush1.xpose.msra.mxu0 0.0
        %1061 = vmatprep.subr.mxu0 0.0
        %1062 = vmatpush1.xpose.msra.mxu0 0.0
        %1063 = vmatprep.subr.mxu0 0.0
        %1064 = vmatpush1.xpose.msra.mxu0 0.0
        %1065 = vmatprep.subr.mxu0 0.0
        %1066 = vmatpush1.xpose.msra.mxu0 0.0
        %1067 = vmatprep.subr.mxu0 0.0
        %1068 = vmatpush1.xpose.msra.mxu0 0.0
        %1069 = vmatprep.subr.mxu0 0.0
        %1070 = vmatpush1.xpose.msra.mxu0 0.0
        %1071 = vmatprep.subr.mxu0 0.0
        %1072 = vmatpush1.xpose.msra.mxu0 0.0
        %1073 = vmatprep.subr.mxu0 0.0
        %1074 = vmatpush1.xpose.msra.mxu0 0.0
        %1075 = vmatprep.subr.mxu0 0.0
        %1076 = vmatpush1.xpose.msra.mxu0 0.0
        %1077 = vmatprep.subr.mxu0 0.0
        %1078 = vmatpush1.xpose.msra.mxu0 %v1045
        %1079 = vmatprep.subr.mxu0 0.0
        %1080 = vmatpush2.xpose.msra.mxu0 0.0
        %1081 = vmatprep.subr.mxu0 0.0
        %1082 = vmatpush2.xpose.msra.mxu0 0.0
        %1083 = vmatprep.subr.mxu0 0.0
        %1084 = vmatpush2.xpose.msra.mxu0 0.0
        %1085 = vmatprep.subr.mxu0 0.0
        %1086 = vmatpush2.xpose.msra.mxu0 0.0
        %1087 = vmatprep.subr.mxu0 0.0
        %1088 = vmatpush2.xpose.msra.mxu0 0.0
        %1089 = vmatprep.subr.mxu0 0.0
        %1090 = vmatpush2.xpose.msra.mxu0 0.0
        %1091 = vmatprep.subr.mxu0 0.0
        %1092 = vmatpush2.xpose.msra.mxu0 0.0
        %1093 = vmatprep.subr.mxu0 0.0
        %1094 = vmatpush2.xpose.msra.mxu0 0.0
        %1095 = vmatprep.subr.mxu0 0.0
        %1096 = vmatpush2.xpose.msra.mxu0 0.0
        %1097 = vmatprep.subr.mxu0 0.0
        %1098 = vmatpush2.xpose.msra.mxu0 0.0
        %1099 = vmatprep.subr.mxu0 0.0
        %1100 = vmatpush2.xpose.msra.mxu0 0.0
        %1101 = vmatprep.subr.mxu0 0.0
        %1102 = vmatpush2.xpose.msra.mxu0 0.0
        %1103 = vmatprep.subr.mxu0 0.0
        %1104 = vmatpush2.xpose.msra.mxu0 0.0
        %1105 = vmatprep.subr.mxu0 0.0
        %1106 = vmatpush2.xpose.msra.mxu0 0.0
        %1107 = vmatprep.subr.mxu0 0.0
        %1108 = vmatpush2.xpose.msra.mxu0 0.0
        %1109 = vmatprep.subr.mxu0 0.0
        %1110 = vmatpush2.xpose.msra.mxu0 0.0
        %1111 = vmatprep.mubr.f32.mxu0 0.0
        %1112 = vmatmul.mubr.f32.gmra.mxu0 %v677
        %v1113 = vpop.f32.mrf.mxu0
        %v1114 = vadd.f32 0.0, %v1113
        %v1115 = vpop.f32.mrf.mxu0
        %1116 = vdwg.mxu0
        %v1118 = vsel %vm362, %v673, 0
        %1120 = vmatprep.subr.mxu0 0.0
        %1121 = vmatpush1.xpose.msra.mxu0 0.0
        %1122 = vmatprep.subr.mxu0 0.0
        %1123 = vmatpush1.xpose.msra.mxu0 0.0
        %1124 = vmatprep.subr.mxu0 0.0
        %1125 = vmatpush1.xpose.msra.mxu0 0.0
        %1126 = vmatprep.subr.mxu0 0.0
        %1127 = vmatpush1.xpose.msra.mxu0 0.0
        %1128 = vmatprep.subr.mxu0 0.0
        %1129 = vmatpush1.xpose.msra.mxu0 0.0
        %1130 = vmatprep.subr.mxu0 0.0
        %1131 = vmatpush1.xpose.msra.mxu0 0.0
        %1132 = vmatprep.subr.mxu0 0.0
        %1133 = vmatpush1.xpose.msra.mxu0 0.0
        %1134 = vmatprep.subr.mxu0 0.0
        %1135 = vmatpush1.xpose.msra.mxu0 0.0
        %1136 = vmatprep.subr.mxu0 0.0
        %1137 = vmatpush1.xpose.msra.mxu0 0.0
        %1138 = vmatprep.subr.mxu0 0.0
        %1139 = vmatpush1.xpose.msra.mxu0 0.0
        %1140 = vmatprep.subr.mxu0 0.0
        %1141 = vmatpush1.xpose.msra.mxu0 0.0
        %1142 = vmatprep.subr.mxu0 0.0
        %1143 = vmatpush1.xpose.msra.mxu0 0.0
        %1144 = vmatprep.subr.mxu0 0.0
        %1145 = vmatpush1.xpose.msra.mxu0 0.0
        %1146 = vmatprep.subr.mxu0 0.0
        %1147 = vmatpush1.xpose.msra.mxu0 0.0
        %1148 = vmatprep.subr.mxu0 0.0
        %1149 = vmatpush1.xpose.msra.mxu0 0.0
        %1150 = vmatprep.subr.mxu0 0.0
        %1151 = vmatpush1.xpose.msra.mxu0 %v1118
        %1152 = vmatprep.subr.mxu0 0.0
        %1153 = vmatpush2.xpose.msra.mxu0 0.0
        %1154 = vmatprep.subr.mxu0 0.0
        %1155 = vmatpush2.xpose.msra.mxu0 0.0
        %1156 = vmatprep.subr.mxu0 0.0
        %1157 = vmatpush2.xpose.msra.mxu0 0.0
        %1158 = vmatprep.subr.mxu0 0.0
        %1159 = vmatpush2.xpose.msra.mxu0 0.0
        %1160 = vmatprep.subr.mxu0 0.0
        %1161 = vmatpush2.xpose.msra.mxu0 0.0
        %1162 = vmatprep.subr.mxu0 0.0
        %1163 = vmatpush2.xpose.msra.mxu0 0.0
        %1164 = vmatprep.subr.mxu0 0.0
        %1165 = vmatpush2.xpose.msra.mxu0 0.0
        %1166 = vmatprep.subr.mxu0 0.0
        %1167 = vmatpush2.xpose.msra.mxu0 0.0
        %1168 = vmatprep.subr.mxu0 0.0
        %1169 = vmatpush2.xpose.msra.mxu0 0.0
        %1170 = vmatprep.subr.mxu0 0.0
        %1171 = vmatpush2.xpose.msra.mxu0 0.0
        %1172 = vmatprep.subr.mxu0 0.0
        %1173 = vmatpush2.xpose.msra.mxu0 0.0
        %1174 = vmatprep.subr.mxu0 0.0
        %1175 = vmatpush2.xpose.msra.mxu0 0.0
        %1176 = vmatprep.subr.mxu0 0.0
        %1177 = vmatpush2.xpose.msra.mxu0 0.0
        %1178 = vmatprep.subr.mxu0 0.0
        %1179 = vmatpush2.xpose.msra.mxu0 0.0
        %1180 = vmatprep.subr.mxu0 0.0
        %1181 = vmatpush2.xpose.msra.mxu0 0.0
        %1182 = vmatprep.subr.mxu0 0.0
        %1183 = vmatpush2.xpose.msra.mxu0 0.0
        %1184 = vmatprep.mubr.f32.mxu0 0.0
        %1185 = vmatmul.mubr.f32.gmra.mxu0 %v677
        %v1186 = vpop.f32.mrf.mxu0
        %v1187 = vadd.f32 0.0, %v1186
        %v1188 = vpop.f32.mrf.mxu0
        %1189 = vdwg.mxu0
        %v1191 = vsel %vm362, %v674, 0
        %1193 = vmatprep.subr.mxu0 0.0
        %1194 = vmatpush1.xpose.msra.mxu0 0.0
        %1195 = vmatprep.subr.mxu0 0.0
        %1196 = vmatpush1.xpose.msra.mxu0 0.0
        %1197 = vmatprep.subr.mxu0 0.0
        %1198 = vmatpush1.xpose.msra.mxu0 0.0
        %1199 = vmatprep.subr.mxu0 0.0
        %1200 = vmatpush1.xpose.msra.mxu0 0.0
        %1201 = vmatprep.subr.mxu0 0.0
        %1202 = vmatpush1.xpose.msra.mxu0 0.0
        %1203 = vmatprep.subr.mxu0 0.0
        %1204 = vmatpush1.xpose.msra.mxu0 0.0
        %1205 = vmatprep.subr.mxu0 0.0
        %1206 = vmatpush1.xpose.msra.mxu0 0.0
        %1207 = vmatprep.subr.mxu0 0.0
        %1208 = vmatpush1.xpose.msra.mxu0 0.0
        %1209 = vmatprep.subr.mxu0 0.0
        %1210 = vmatpush1.xpose.msra.mxu0 0.0
        %1211 = vmatprep.subr.mxu0 0.0
        %1212 = vmatpush1.xpose.msra.mxu0 0.0
        %1213 = vmatprep.subr.mxu0 0.0
        %1214 = vmatpush1.xpose.msra.mxu0 0.0
        %1215 = vmatprep.subr.mxu0 0.0
        %1216 = vmatpush1.xpose.msra.mxu0 0.0
        %1217 = vmatprep.subr.mxu0 0.0
        %1218 = vmatpush1.xpose.msra.mxu0 0.0
        %1219 = vmatprep.subr.mxu0 0.0
        %1220 = vmatpush1.xpose.msra.mxu0 0.0
        %1221 = vmatprep.subr.mxu0 0.0
        %1222 = vmatpush1.xpose.msra.mxu0 0.0
        %1223 = vmatprep.subr.mxu0 0.0
        %1224 = vmatpush1.xpose.msra.mxu0 %v1191
        %1225 = vmatprep.subr.mxu0 0.0
        %1226 = vmatpush2.xpose.msra.mxu0 0.0
        %1227 = vmatprep.subr.mxu0 0.0
        %1228 = vmatpush2.xpose.msra.mxu0 0.0
        %1229 = vmatprep.subr.mxu0 0.0
        %1230 = vmatpush2.xpose.msra.mxu0 0.0
        %1231 = vmatprep.subr.mxu0 0.0
        %1232 = vmatpush2.xpose.msra.mxu0 0.0
        %1233 = vmatprep.subr.mxu0 0.0
        %1234 = vmatpush2.xpose.msra.mxu0 0.0
        %1235 = vmatprep.subr.mxu0 0.0
        %1236 = vmatpush2.xpose.msra.mxu0 0.0
        %1237 = vmatprep.subr.mxu0 0.0
        %1238 = vmatpush2.xpose.msra.mxu0 0.0
        %1239 = vmatprep.subr.mxu0 0.0
        %1240 = vmatpush2.xpose.msra.mxu0 0.0
        %1241 = vmatprep.subr.mxu0 0.0
        %1242 = vmatpush2.xpose.msra.mxu0 0.0
        %1243 = vmatprep.subr.mxu0 0.0
        %1244 = vmatpush2.xpose.msra.mxu0 0.0
        %1245 = vmatprep.subr.mxu0 0.0
        %1246 = vmatpush2.xpose.msra.mxu0 0.0
        %1247 = vmatprep.subr.mxu0 0.0
        %1248 = vmatpush2.xpose.msra.mxu0 0.0
        %1249 = vmatprep.subr.mxu0 0.0
        %1250 = vmatpush2.xpose.msra.mxu0 0.0
        %1251 = vmatprep.subr.mxu0 0.0
        %1252 = vmatpush2.xpose.msra.mxu0 0.0
        %1253 = vmatprep.subr.mxu0 0.0
        %1254 = vmatpush2.xpose.msra.mxu0 0.0
        %1255 = vmatprep.subr.mxu0 0.0
        %1256 = vmatpush2.xpose.msra.mxu0 0.0
        %1257 = vmatprep.mubr.f32.mxu0 0.0
        %1258 = vmatmul.mubr.f32.gmra.mxu0 %v677
        %v1259 = vpop.f32.mrf.mxu0
        %v1260 = vadd.f32 0.0, %v1259
        %v1261 = vpop.f32.mrf.mxu0
        %1262 = vdwg.mxu0
        %vm1263 = vcmask 57344
        %v1264 = vsel %vm1263, %v749, -inf
        %1265 = vmax.xlane.f32.xlu0 %v1264
        %v1266 = vpop.xlane.xlu0 %1265
        %v1267 = vsel %vm1263, %v822, -inf
        %1268 = vmax.xlane.f32.xlu0 %v1267
        %v1269 = vpop.xlane.xlu0 %1268
        %v1270 = vsel %vm1263, %v895, -inf
        %1271 = vmax.xlane.f32.xlu0 %v1270
        %v1272 = vpop.xlane.xlu0 %1271
        %v1273 = vsel %vm1263, %v968, -inf
        %1274 = vmax.xlane.f32.xlu0 %v1273
        %v1275 = vpop.xlane.xlu0 %1274
        %v1276 = vsel %vm1263, %v1041, -inf
        %1277 = vmax.xlane.f32.xlu0 %v1276
        %v1278 = vpop.xlane.xlu0 %1277
        %v1279 = vsel %vm1263, %v1114, -inf
        %1280 = vmax.xlane.f32.xlu0 %v1279
        %v1281 = vpop.xlane.xlu0 %1280
        %v1282 = vsel %vm1263, %v1187, -inf
        %1283 = vmax.xlane.f32.xlu0 %v1282
        %v1284 = vpop.xlane.xlu0 %1283
        %v1285 = vsel %vm1263, %v1260, -inf
        %1286 = vmax.xlane.f32.xlu0 %v1285
        %v1287 = vpop.xlane.xlu0 %1286
        %v1288 = vsub.f32 %v749, %v1266
        %v1289 = vsub.f32 %v822, %v1269
        %v1290 = vsub.f32 %v895, %v1272
        %v1291 = vsub.f32 %v968, %v1275
        %v1292 = vsub.f32 %v1041, %v1278
        %v1293 = vsub.f32 %v1114, %v1281
        %v1294 = vsub.f32 %v1187, %v1284
        %v1295 = vsub.f32 %v1260, %v1287
        %v1296 = vmul.f32 %v1288, 1.442695
        %v1297 = vpow.pop %v1296
        %v1298 = vmul.f32 %v1289, 1.442695
        %v1299 = vpow.pop %v1298
        %v1300 = vmul.f32 %v1290, 1.442695
        %v1301 = vpow.pop %v1300
        %v1302 = vmul.f32 %v1291, 1.442695
        %v1303 = vpow.pop %v1302
        %v1304 = vmul.f32 %v1292, 1.442695
        %v1305 = vpow.pop %v1304
        %v1306 = vmul.f32 %v1293, 1.442695
        %v1307 = vpow.pop %v1306
        %v1308 = vmul.f32 %v1294, 1.442695
        %v1309 = vpow.pop %v1308
        %v1310 = vmul.f32 %v1295, 1.442695
        %v1311 = vpow.pop %v1310
        %v1312 = vsel %vm1263, %v1297, 0.0
        %1313 = vadd.xlane.f32.xlu0 %v1312
        %v1314 = vpop.xlane.xlu0 %1313
        %v1315 = vsel %vm1263, %v1299, 0.0
        %1316 = vadd.xlane.f32.xlu0 %v1315
        %v1317 = vpop.xlane.xlu0 %1316
        %v1318 = vsel %vm1263, %v1301, 0.0
        %1319 = vadd.xlane.f32.xlu0 %v1318
        %v1320 = vpop.xlane.xlu0 %1319
        %v1321 = vsel %vm1263, %v1303, 0.0
        %1322 = vadd.xlane.f32.xlu0 %v1321
        %v1323 = vpop.xlane.xlu0 %1322
        %v1324 = vsel %vm1263, %v1305, 0.0
        %1325 = vadd.xlane.f32.xlu0 %v1324
        %v1326 = vpop.xlane.xlu0 %1325
        %v1327 = vsel %vm1263, %v1307, 0.0
        %1328 = vadd.xlane.f32.xlu0 %v1327
        %v1329 = vpop.xlane.xlu0 %1328
        %v1330 = vsel %vm1263, %v1309, 0.0
        %1331 = vadd.xlane.f32.xlu0 %v1330
        %v1332 = vpop.xlane.xlu0 %1331
        %v1333 = vsel %vm1263, %v1311, 0.0
        %1334 = vadd.xlane.f32.xlu0 %v1333
        %v1335 = vpop.xlane.xlu0 %1334
        %v1336 = vrcp.pop %v1314
        %v1337 = vrcp.pop %v1317
        %v1338 = vrcp.pop %v1320
        %v1339 = vrcp.pop %v1323
        %v1340 = vrcp.pop %v1326
        %v1341 = vrcp.pop %v1329
        %v1342 = vrcp.pop %v1332
        %v1343 = vrcp.pop %v1335
        %v1344 = vmul.f32 %v1297, %v1336
        %v1345 = vmul.f32 %v1299, %v1337
        %v1346 = vmul.f32 %v1301, %v1338
        %v1347 = vmul.f32 %v1303, %v1339
        %v1348 = vmul.f32 %v1305, %v1340
        %v1349 = vmul.f32 %v1307, %v1341
        %v1350 = vmul.f32 %v1309, %v1342
        %v1351 = vmul.f32 %v1311, %v1343
        %vm1352 = vcmask 64512
        %v1354 = vsel %vm1352, %v1344, 0
        %1356 = vmatprep.subr.mxu0 0.0
        %1357 = vmatpush1.msra.mxu0 0.0
        %1358 = vmatprep.subr.mxu0 0.0
        %1359 = vmatpush1.msra.mxu0 0.0
        %1360 = vmatprep.subr.mxu0 0.0
        %1361 = vmatpush1.msra.mxu0 0.0
        %1362 = vmatprep.subr.mxu0 0.0
        %1363 = vmatpush1.msra.mxu0 0.0
        %1364 = vmatprep.subr.mxu0 0.0
        %1365 = vmatpush1.msra.mxu0 0.0
        %1366 = vmatprep.subr.mxu0 0.0
        %1367 = vmatpush1.msra.mxu0 0.0
        %1368 = vmatprep.subr.mxu0 0.0
        %1369 = vmatpush1.msra.mxu0 0.0
        %1370 = vmatprep.subr.mxu0 0.0
        %1371 = vmatpush1.msra.mxu0 0.0
        %1372 = vmatprep.subr.mxu0 0.0
        %1373 = vmatpush1.msra.mxu0 0.0
        %1374 = vmatprep.subr.mxu0 0.0
        %1375 = vmatpush1.msra.mxu0 0.0
        %1376 = vmatprep.subr.mxu0 0.0
        %1377 = vmatpush1.msra.mxu0 0.0
        %1378 = vmatprep.subr.mxu0 0.0
        %1379 = vmatpush1.msra.mxu0 0.0
        %1380 = vmatprep.subr.mxu0 0.0
        %1381 = vmatpush1.msra.mxu0 0.0
        %1382 = vmatprep.subr.mxu0 0.0
        %1383 = vmatpush1.msra.mxu0 0.0
        %1384 = vmatprep.subr.mxu0 0.0
        %1385 = vmatpush1.msra.mxu0 0.0
        %1386 = vmatprep.subr.mxu0 0.0
        %1387 = vmatpush1.msra.mxu0 %v349
        %1388 = vmatprep.subr.mxu0 0.0
        %1389 = vmatpush2.msra.mxu0 0.0
        %1390 = vmatprep.subr.mxu0 0.0
        %1391 = vmatpush2.msra.mxu0 0.0
        %1392 = vmatprep.subr.mxu0 0.0
        %1393 = vmatpush2.msra.mxu0 0.0
        %1394 = vmatprep.subr.mxu0 0.0
        %1395 = vmatpush2.msra.mxu0 0.0
        %1396 = vmatprep.subr.mxu0 0.0
        %1397 = vmatpush2.msra.mxu0 0.0
        %1398 = vmatprep.subr.mxu0 0.0
        %1399 = vmatpush2.msra.mxu0 0.0
        %1400 = vmatprep.subr.mxu0 0.0
        %1401 = vmatpush2.msra.mxu0 0.0
        %1402 = vmatprep.subr.mxu0 0.0
        %1403 = vmatpush2.msra.mxu0 0.0
        %1404 = vmatprep.subr.mxu0 0.0
        %1405 = vmatpush2.msra.mxu0 0.0
        %1406 = vmatprep.subr.mxu0 0.0
        %1407 = vmatpush2.msra.mxu0 0.0
        %1408 = vmatprep.subr.mxu0 0.0
        %1409 = vmatpush2.msra.mxu0 0.0
        %1410 = vmatprep.subr.mxu0 0.0
        %1411 = vmatpush2.msra.mxu0 0.0
        %1412 = vmatprep.subr.mxu0 0.0
        %1413 = vmatpush2.msra.mxu0 0.0
        %1414 = vmatprep.subr.mxu0 0.0
        %1415 = vmatpush2.msra.mxu0 0.0
        %1416 = vmatprep.subr.mxu0 0.0
        %1417 = vmatpush2.msra.mxu0 0.0
        %1418 = vmatprep.subr.mxu0 0.0
        %1419 = vmatpush2.msra.mxu0 0.0
        %1420 = vmatprep.mubr.f32.mxu0 0.0
        %1421 = vmatmul.mubr.f32.gmra.mxu0 %v1354
        %v1422 = vpop.f32.mrf.mxu0
        %v1423 = vadd.f32 0.0, %v1422
        %v1424 = vpop.f32.mrf.mxu0
        %1425 = vdwg.mxu0
        %v1427 = vsel %vm1352, %v1345, 0
        %1429 = vmatprep.subr.mxu0 0.0
        %1430 = vmatpush1.msra.mxu0 0.0
        %1431 = vmatprep.subr.mxu0 0.0
        %1432 = vmatpush1.msra.mxu0 0.0
        %1433 = vmatprep.subr.mxu0 0.0
        %1434 = vmatpush1.msra.mxu0 0.0
        %1435 = vmatprep.subr.mxu0 0.0
        %1436 = vmatpush1.msra.mxu0 0.0
        %1437 = vmatprep.subr.mxu0 0.0
        %1438 = vmatpush1.msra.mxu0 0.0
        %1439 = vmatprep.subr.mxu0 0.0
        %1440 = vmatpush1.msra.mxu0 0.0
        %1441 = vmatprep.subr.mxu0 0.0
        %1442 = vmatpush1.msra.mxu0 0.0
        %1443 = vmatprep.subr.mxu0 0.0
        %1444 = vmatpush1.msra.mxu0 0.0
        %1445 = vmatprep.subr.mxu0 0.0
        %1446 = vmatpush1.msra.mxu0 0.0
        %1447 = vmatprep.subr.mxu0 0.0
        %1448 = vmatpush1.msra.mxu0 0.0
        %1449 = vmatprep.subr.mxu0 0.0
        %1450 = vmatpush1.msra.mxu0 0.0
        %1451 = vmatprep.subr.mxu0 0.0
        %1452 = vmatpush1.msra.mxu0 0.0
        %1453 = vmatprep.subr.mxu0 0.0
        %1454 = vmatpush1.msra.mxu0 0.0
        %1455 = vmatprep.subr.mxu0 0.0
        %1456 = vmatpush1.msra.mxu0 0.0
        %1457 = vmatprep.subr.mxu0 0.0
        %1458 = vmatpush1.msra.mxu0 0.0
        %1459 = vmatprep.subr.mxu0 0.0
        %1460 = vmatpush1.msra.mxu0 %v350
        %1461 = vmatprep.subr.mxu0 0.0
        %1462 = vmatpush2.msra.mxu0 0.0
        %1463 = vmatprep.subr.mxu0 0.0
        %1464 = vmatpush2.msra.mxu0 0.0
        %1465 = vmatprep.subr.mxu0 0.0
        %1466 = vmatpush2.msra.mxu0 0.0
        %1467 = vmatprep.subr.mxu0 0.0
        %1468 = vmatpush2.msra.mxu0 0.0
        %1469 = vmatprep.subr.mxu0 0.0
        %1470 = vmatpush2.msra.mxu0 0.0
        %1471 = vmatprep.subr.mxu0 0.0
        %1472 = vmatpush2.msra.mxu0 0.0
        %1473 = vmatprep.subr.mxu0 0.0
        %1474 = vmatpush2.msra.mxu0 0.0
        %1475 = vmatprep.subr.mxu0 0.0
        %1476 = vmatpush2.msra.mxu0 0.0
        %1477 = vmatprep.subr.mxu0 0.0
        %1478 = vmatpush2.msra.mxu0 0.0
        %1479 = vmatprep.subr.mxu0 0.0
        %1480 = vmatpush2.msra.mxu0 0.0
        %1481 = vmatprep.subr.mxu0 0.0
        %1482 = vmatpush2.msra.mxu0 0.0
        %1483 = vmatprep.subr.mxu0 0.0
        %1484 = vmatpush2.msra.mxu0 0.0
        %1485 = vmatprep.subr.mxu0 0.0
        %1486 = vmatpush2.msra.mxu0 0.0
        %1487 = vmatprep.subr.mxu0 0.0
        %1488 = vmatpush2.msra.mxu0 0.0
        %1489 = vmatprep.subr.mxu0 0.0
        %1490 = vmatpush2.msra.mxu0 0.0
        %1491 = vmatprep.subr.mxu0 0.0
        %1492 = vmatpush2.msra.mxu0 0.0
        %1493 = vmatprep.mubr.f32.mxu0 0.0
        %1494 = vmatmul.mubr.f32.gmra.mxu0 %v1427
        %v1495 = vpop.f32.mrf.mxu0
        %v1496 = vadd.f32 0.0, %v1495
        %v1497 = vpop.f32.mrf.mxu0
        %1498 = vdwg.mxu0
        %v1500 = vsel %vm1352, %v1346, 0
        %1502 = vmatprep.subr.mxu0 0.0
        %1503 = vmatpush1.msra.mxu0 0.0
        %1504 = vmatprep.subr.mxu0 0.0
        %1505 = vmatpush1.msra.mxu0 0.0
        %1506 = vmatprep.subr.mxu0 0.0
        %1507 = vmatpush1.msra.mxu0 0.0
        %1508 = vmatprep.subr.mxu0 0.0
        %1509 = vmatpush1.msra.mxu0 0.0
        %1510 = vmatprep.subr.mxu0 0.0
        %1511 = vmatpush1.msra.mxu0 0.0
        %1512 = vmatprep.subr.mxu0 0.0
        %1513 = vmatpush1.msra.mxu0 0.0
        %1514 = vmatprep.subr.mxu0 0.0
        %1515 = vmatpush1.msra.mxu0 0.0
        %1516 = vmatprep.subr.mxu0 0.0
        %1517 = vmatpush1.msra.mxu0 0.0
        %1518 = vmatprep.subr.mxu0 0.0
        %1519 = vmatpush1.msra.mxu0 0.0
        %1520 = vmatprep.subr.mxu0 0.0
        %1521 = vmatpush1.msra.mxu0 0.0
        %1522 = vmatprep.subr.mxu0 0.0
        %1523 = vmatpush1.msra.mxu0 0.0
        %1524 = vmatprep.subr.mxu0 0.0
        %1525 = vmatpush1.msra.mxu0 0.0
        %1526 = vmatprep.subr.mxu0 0.0
        %1527 = vmatpush1.msra.mxu0 0.0
        %1528 = vmatprep.subr.mxu0 0.0
        %1529 = vmatpush1.msra.mxu0 0.0
        %1530 = vmatprep.subr.mxu0 0.0
        %1531 = vmatpush1.msra.mxu0 0.0
        %1532 = vmatprep.subr.mxu0 0.0
        %1533 = vmatpush1.msra.mxu0 %v351
        %1534 = vmatprep.subr.mxu0 0.0
        %1535 = vmatpush2.msra.mxu0 0.0
        %1536 = vmatprep.subr.mxu0 0.0
        %1537 = vmatpush2.msra.mxu0 0.0
        %1538 = vmatprep.subr.mxu0 0.0
        %1539 = vmatpush2.msra.mxu0 0.0
        %1540 = vmatprep.subr.mxu0 0.0
        %1541 = vmatpush2.msra.mxu0 0.0
        %1542 = vmatprep.subr.mxu0 0.0
        %1543 = vmatpush2.msra.mxu0 0.0
        %1544 = vmatprep.subr.mxu0 0.0
        %1545 = vmatpush2.msra.mxu0 0.0
        %1546 = vmatprep.subr.mxu0 0.0
        %1547 = vmatpush2.msra.mxu0 0.0
        %1548 = vmatprep.subr.mxu0 0.0
        %1549 = vmatpush2.msra.mxu0 0.0
        %1550 = vmatprep.subr.mxu0 0.0
        %1551 = vmatpush2.msra.mxu0 0.0
        %1552 = vmatprep.subr.mxu0 0.0
        %1553 = vmatpush2.msra.mxu0 0.0
        %1554 = vmatprep.subr.mxu0 0.0
        %1555 = vmatpush2.msra.mxu0 0.0
        %1556 = vmatprep.subr.mxu0 0.0
        %1557 = vmatpush2.msra.mxu0 0.0
        %1558 = vmatprep.subr.mxu0 0.0
        %1559 = vmatpush2.msra.mxu0 0.0
        %1560 = vmatprep.subr.mxu0 0.0
        %1561 = vmatpush2.msra.mxu0 0.0
        %1562 = vmatprep.subr.mxu0 0.0
        %1563 = vmatpush2.msra.mxu0 0.0
        %1564 = vmatprep.subr.mxu0 0.0
        %1565 = vmatpush2.msra.mxu0 0.0
        %1566 = vmatprep.mubr.f32.mxu0 0.0
        %1567 = vmatmul.mubr.f32.gmra.mxu0 %v1500
        %v1568 = vpop.f32.mrf.mxu0
        %v1569 = vadd.f32 0.0, %v1568
        %v1570 = vpop.f32.mrf.mxu0
        %1571 = vdwg.mxu0
        %v1573 = vsel %vm1352, %v1347, 0
        %1575 = vmatprep.subr.mxu0 0.0
        %1576 = vmatpush1.msra.mxu0 0.0
        %1577 = vmatprep.subr.mxu0 0.0
        %1578 = vmatpush1.msra.mxu0 0.0
        %1579 = vmatprep.subr.mxu0 0.0
        %1580 = vmatpush1.msra.mxu0 0.0
        %1581 = vmatprep.subr.mxu0 0.0
        %1582 = vmatpush1.msra.mxu0 0.0
        %1583 = vmatprep.subr.mxu0 0.0
        %1584 = vmatpush1.msra.mxu0 0.0
        %1585 = vmatprep.subr.mxu0 0.0
        %1586 = vmatpush1.msra.mxu0 0.0
        %1587 = vmatprep.subr.mxu0 0.0
        %1588 = vmatpush1.msra.mxu0 0.0
        %1589 = vmatprep.subr.mxu0 0.0
        %1590 = vmatpush1.msra.mxu0 0.0
        %1591 = vmatprep.subr.mxu0 0.0
        %1592 = vmatpush1.msra.mxu0 0.0
        %1593 = vmatprep.subr.mxu0 0.0
        %1594 = vmatpush1.msra.mxu0 0.0
        %1595 = vmatprep.subr.mxu0 0.0
        %1596 = vmatpush1.msra.mxu0 0.0
        %1597 = vmatprep.subr.mxu0 0.0
        %1598 = vmatpush1.msra.mxu0 0.0
        %1599 = vmatprep.subr.mxu0 0.0
        %1600 = vmatpush1.msra.mxu0 0.0
        %1601 = vmatprep.subr.mxu0 0.0
        %1602 = vmatpush1.msra.mxu0 0.0
        %1603 = vmatprep.subr.mxu0 0.0
        %1604 = vmatpush1.msra.mxu0 0.0
        %1605 = vmatprep.subr.mxu0 0.0
        %1606 = vmatpush1.msra.mxu0 %v352
        %1607 = vmatprep.subr.mxu0 0.0
        %1608 = vmatpush2.msra.mxu0 0.0
        %1609 = vmatprep.subr.mxu0 0.0
        %1610 = vmatpush2.msra.mxu0 0.0
        %1611 = vmatprep.subr.mxu0 0.0
        %1612 = vmatpush2.msra.mxu0 0.0
        %1613 = vmatprep.subr.mxu0 0.0
        %1614 = vmatpush2.msra.mxu0 0.0
        %1615 = vmatprep.subr.mxu0 0.0
        %1616 = vmatpush2.msra.mxu0 0.0
        %1617 = vmatprep.subr.mxu0 0.0
        %1618 = vmatpush2.msra.mxu0 0.0
        %1619 = vmatprep.subr.mxu0 0.0
        %1620 = vmatpush2.msra.mxu0 0.0
        %1621 = vmatprep.subr.mxu0 0.0
        %1622 = vmatpush2.msra.mxu0 0.0
        %1623 = vmatprep.subr.mxu0 0.0
        %1624 = vmatpush2.msra.mxu0 0.0
        %1625 = vmatprep.subr.mxu0 0.0
        %1626 = vmatpush2.msra.mxu0 0.0
        %1627 = vmatprep.subr.mxu0 0.0
        %1628 = vmatpush2.msra.mxu0 0.0
        %1629 = vmatprep.subr.mxu0 0.0
        %1630 = vmatpush2.msra.mxu0 0.0
        %1631 = vmatprep.subr.mxu0 0.0
        %1632 = vmatpush2.msra.mxu0 0.0
        %1633 = vmatprep.subr.mxu0 0.0
        %1634 = vmatpush2.msra.mxu0 0.0
        %1635 = vmatprep.subr.mxu0 0.0
        %1636 = vmatpush2.msra.mxu0 0.0
        %1637 = vmatprep.subr.mxu0 0.0
        %1638 = vmatpush2.msra.mxu0 0.0
        %1639 = vmatprep.mubr.f32.mxu0 0.0
        %1640 = vmatmul.mubr.f32.gmra.mxu0 %v1573
        %v1641 = vpop.f32.mrf.mxu0
        %v1642 = vadd.f32 0.0, %v1641
        %v1643 = vpop.f32.mrf.mxu0
        %1644 = vdwg.mxu0
        %v1646 = vsel %vm1352, %v1348, 0
        %1648 = vmatprep.subr.mxu0 0.0
        %1649 = vmatpush1.msra.mxu0 0.0
        %1650 = vmatprep.subr.mxu0 0.0
        %1651 = vmatpush1.msra.mxu0 0.0
        %1652 = vmatprep.subr.mxu0 0.0
        %1653 = vmatpush1.msra.mxu0 0.0
        %1654 = vmatprep.subr.mxu0 0.0
        %1655 = vmatpush1.msra.mxu0 0.0
        %1656 = vmatprep.subr.mxu0 0.0
        %1657 = vmatpush1.msra.mxu0 0.0
        %1658 = vmatprep.subr.mxu0 0.0
        %1659 = vmatpush1.msra.mxu0 0.0
        %1660 = vmatprep.subr.mxu0 0.0
        %1661 = vmatpush1.msra.mxu0 0.0
        %1662 = vmatprep.subr.mxu0 0.0
        %1663 = vmatpush1.msra.mxu0 0.0
        %1664 = vmatprep.subr.mxu0 0.0
        %1665 = vmatpush1.msra.mxu0 0.0
        %1666 = vmatprep.subr.mxu0 0.0
        %1667 = vmatpush1.msra.mxu0 0.0
        %1668 = vmatprep.subr.mxu0 0.0
        %1669 = vmatpush1.msra.mxu0 0.0
        %1670 = vmatprep.subr.mxu0 0.0
        %1671 = vmatpush1.msra.mxu0 0.0
        %1672 = vmatprep.subr.mxu0 0.0
        %1673 = vmatpush1.msra.mxu0 0.0
        %1674 = vmatprep.subr.mxu0 0.0
        %1675 = vmatpush1.msra.mxu0 0.0
        %1676 = vmatprep.subr.mxu0 0.0
        %1677 = vmatpush1.msra.mxu0 0.0
        %1678 = vmatprep.subr.mxu0 0.0
        %1679 = vmatpush1.msra.mxu0 %v353
        %1680 = vmatprep.subr.mxu0 0.0
        %1681 = vmatpush2.msra.mxu0 0.0
        %1682 = vmatprep.subr.mxu0 0.0
        %1683 = vmatpush2.msra.mxu0 0.0
        %1684 = vmatprep.subr.mxu0 0.0
        %1685 = vmatpush2.msra.mxu0 0.0
        %1686 = vmatprep.subr.mxu0 0.0
        %1687 = vmatpush2.msra.mxu0 0.0
        %1688 = vmatprep.subr.mxu0 0.0
        %1689 = vmatpush2.msra.mxu0 0.0
        %1690 = vmatprep.subr.mxu0 0.0
        %1691 = vmatpush2.msra.mxu0 0.0
        %1692 = vmatprep.subr.mxu0 0.0
        %1693 = vmatpush2.msra.mxu0 0.0
        %1694 = vmatprep.subr.mxu0 0.0
        %1695 = vmatpush2.msra.mxu0 0.0
        %1696 = vmatprep.subr.mxu0 0.0
        %1697 = vmatpush2.msra.mxu0 0.0
        %1698 = vmatprep.subr.mxu0 0.0
        %1699 = vmatpush2.msra.mxu0 0.0
        %1700 = vmatprep.subr.mxu0 0.0
        %1701 = vmatpush2.msra.mxu0 0.0
        %1702 = vmatprep.subr.mxu0 0.0
        %1703 = vmatpush2.msra.mxu0 0.0
        %1704 = vmatprep.subr.mxu0 0.0
        %1705 = vmatpush2.msra.mxu0 0.0
        %1706 = vmatprep.subr.mxu0 0.0
        %1707 = vmatpush2.msra.mxu0 0.0
        %1708 = vmatprep.subr.mxu0 0.0
        %1709 = vmatpush2.msra.mxu0 0.0
        %1710 = vmatprep.subr.mxu0 0.0
        %1711 = vmatpush2.msra.mxu0 0.0
        %1712 = vmatprep.mubr.f32.mxu0 0.0
        %1713 = vmatmul.mubr.f32.gmra.mxu0 %v1646
        %v1714 = vpop.f32.mrf.mxu0
        %v1715 = vadd.f32 0.0, %v1714
        %v1716 = vpop.f32.mrf.mxu0
        %1717 = vdwg.mxu0
        %v1719 = vsel %vm1352, %v1349, 0
        %1721 = vmatprep.subr.mxu0 0.0
        %1722 = vmatpush1.msra.mxu0 0.0
        %1723 = vmatprep.subr.mxu0 0.0
        %1724 = vmatpush1.msra.mxu0 0.0
        %1725 = vmatprep.subr.mxu0 0.0
        %1726 = vmatpush1.msra.mxu0 0.0
        %1727 = vmatprep.subr.mxu0 0.0
        %1728 = vmatpush1.msra.mxu0 0.0
        %1729 = vmatprep.subr.mxu0 0.0
        %1730 = vmatpush1.msra.mxu0 0.0
        %1731 = vmatprep.subr.mxu0 0.0
        %1732 = vmatpush1.msra.mxu0 0.0
        %1733 = vmatprep.subr.mxu0 0.0
        %1734 = vmatpush1.msra.mxu0 0.0
        %1735 = vmatprep.subr.mxu0 0.0
        %1736 = vmatpush1.msra.mxu0 0.0
        %1737 = vmatprep.subr.mxu0 0.0
        %1738 = vmatpush1.msra.mxu0 0.0
        %1739 = vmatprep.subr.mxu0 0.0
        %1740 = vmatpush1.msra.mxu0 0.0
        %1741 = vmatprep.subr.mxu0 0.0
        %1742 = vmatpush1.msra.mxu0 0.0
        %1743 = vmatprep.subr.mxu0 0.0
        %1744 = vmatpush1.msra.mxu0 0.0
        %1745 = vmatprep.subr.mxu0 0.0
        %1746 = vmatpush1.msra.mxu0 0.0
        %1747 = vmatprep.subr.mxu0 0.0
        %1748 = vmatpush1.msra.mxu0 0.0
        %1749 = vmatprep.subr.mxu0 0.0
        %1750 = vmatpush1.msra.mxu0 0.0
        %1751 = vmatprep.subr.mxu0 0.0
        %1752 = vmatpush1.msra.mxu0 %v354
        %1753 = vmatprep.subr.mxu0 0.0
        %1754 = vmatpush2.msra.mxu0 0.0
        %1755 = vmatprep.subr.mxu0 0.0
        %1756 = vmatpush2.msra.mxu0 0.0
        %1757 = vmatprep.subr.mxu0 0.0
        %1758 = vmatpush2.msra.mxu0 0.0
        %1759 = vmatprep.subr.mxu0 0.0
        %1760 = vmatpush2.msra.mxu0 0.0
        %1761 = vmatprep.subr.mxu0 0.0
        %1762 = vmatpush2.msra.mxu0 0.0
        %1763 = vmatprep.subr.mxu0 0.0
        %1764 = vmatpush2.msra.mxu0 0.0
        %1765 = vmatprep.subr.mxu0 0.0
        %1766 = vmatpush2.msra.mxu0 0.0
        %1767 = vmatprep.subr.mxu0 0.0
        %1768 = vmatpush2.msra.mxu0 0.0
        %1769 = vmatprep.subr.mxu0 0.0
        %1770 = vmatpush2.msra.mxu0 0.0
        %1771 = vmatprep.subr.mxu0 0.0
        %1772 = vmatpush2.msra.mxu0 0.0
        %1773 = vmatprep.subr.mxu0 0.0
        %1774 = vmatpush2.msra.mxu0 0.0
        %1775 = vmatprep.subr.mxu0 0.0
        %1776 = vmatpush2.msra.mxu0 0.0
        %1777 = vmatprep.subr.mxu0 0.0
        %1778 = vmatpush2.msra.mxu0 0.0
        %1779 = vmatprep.subr.mxu0 0.0
        %1780 = vmatpush2.msra.mxu0 0.0
        %1781 = vmatprep.subr.mxu0 0.0
        %1782 = vmatpush2.msra.mxu0 0.0
        %1783 = vmatprep.subr.mxu0 0.0
        %1784 = vmatpush2.msra.mxu0 0.0
        %1785 = vmatprep.mubr.f32.mxu0 0.0
        %1786 = vmatmul.mubr.f32.gmra.mxu0 %v1719
        %v1787 = vpop.f32.mrf.mxu0
        %v1788 = vadd.f32 0.0, %v1787
        %v1789 = vpop.f32.mrf.mxu0
        %1790 = vdwg.mxu0
        %v1792 = vsel %vm1352, %v1350, 0
        %1794 = vmatprep.subr.mxu0 0.0
        %1795 = vmatpush1.msra.mxu0 0.0
        %1796 = vmatprep.subr.mxu0 0.0
        %1797 = vmatpush1.msra.mxu0 0.0
        %1798 = vmatprep.subr.mxu0 0.0
        %1799 = vmatpush1.msra.mxu0 0.0
        %1800 = vmatprep.subr.mxu0 0.0
        %1801 = vmatpush1.msra.mxu0 0.0
        %1802 = vmatprep.subr.mxu0 0.0
        %1803 = vmatpush1.msra.mxu0 0.0
        %1804 = vmatprep.subr.mxu0 0.0
        %1805 = vmatpush1.msra.mxu0 0.0
        %1806 = vmatprep.subr.mxu0 0.0
        %1807 = vmatpush1.msra.mxu0 0.0
        %1808 = vmatprep.subr.mxu0 0.0
        %1809 = vmatpush1.msra.mxu0 0.0
        %1810 = vmatprep.subr.mxu0 0.0
        %1811 = vmatpush1.msra.mxu0 0.0
        %1812 = vmatprep.subr.mxu0 0.0
        %1813 = vmatpush1.msra.mxu0 0.0
        %1814 = vmatprep.subr.mxu0 0.0
        %1815 = vmatpush1.msra.mxu0 0.0
        %1816 = vmatprep.subr.mxu0 0.0
        %1817 = vmatpush1.msra.mxu0 0.0
        %1818 = vmatprep.subr.mxu0 0.0
        %1819 = vmatpush1.msra.mxu0 0.0
        %1820 = vmatprep.subr.mxu0 0.0
        %1821 = vmatpush1.msra.mxu0 0.0
        %1822 = vmatprep.subr.mxu0 0.0
        %1823 = vmatpush1.msra.mxu0 0.0
        %1824 = vmatprep.subr.mxu0 0.0
        %1825 = vmatpush1.msra.mxu0 %v355
        %1826 = vmatprep.subr.mxu0 0.0
        %1827 = vmatpush2.msra.mxu0 0.0
        %1828 = vmatprep.subr.mxu0 0.0
        %1829 = vmatpush2.msra.mxu0 0.0
        %1830 = vmatprep.subr.mxu0 0.0
        %1831 = vmatpush2.msra.mxu0 0.0
        %1832 = vmatprep.subr.mxu0 0.0
        %1833 = vmatpush2.msra.mxu0 0.0
        %1834 = vmatprep.subr.mxu0 0.0
        %1835 = vmatpush2.msra.mxu0 0.0
        %1836 = vmatprep.subr.mxu0 0.0
        %1837 = vmatpush2.msra.mxu0 0.0
        %1838 = vmatprep.subr.mxu0 0.0
        %1839 = vmatpush2.msra.mxu0 0.0
        %1840 = vmatprep.subr.mxu0 0.0
        %1841 = vmatpush2.msra.mxu0 0.0
        %1842 = vmatprep.subr.mxu0 0.0
        %1843 = vmatpush2.msra.mxu0 0.0
        %1844 = vmatprep.subr.mxu0 0.0
        %1845 = vmatpush2.msra.mxu0 0.0
        %1846 = vmatprep.subr.mxu0 0.0
        %1847 = vmatpush2.msra.mxu0 0.0
        %1848 = vmatprep.subr.mxu0 0.0
        %1849 = vmatpush2.msra.mxu0 0.0
        %1850 = vmatprep.subr.mxu0 0.0
        %1851 = vmatpush2.msra.mxu0 0.0
        %1852 = vmatprep.subr.mxu0 0.0
        %1853 = vmatpush2.msra.mxu0 0.0
        %1854 = vmatprep.subr.mxu0 0.0
        %1855 = vmatpush2.msra.mxu0 0.0
        %1856 = vmatprep.subr.mxu0 0.0
        %1857 = vmatpush2.msra.mxu0 0.0
        %1858 = vmatprep.mubr.f32.mxu0 0.0
        %1859 = vmatmul.mubr.f32.gmra.mxu0 %v1792
        %v1860 = vpop.f32.mrf.mxu0
        %v1861 = vadd.f32 0.0, %v1860
        %v1862 = vpop.f32.mrf.mxu0
        %1863 = vdwg.mxu0
        %v1865 = vsel %vm1352, %v1351, 0
        %1867 = vmatprep.subr.mxu0 0.0
        %1868 = vmatpush1.msra.mxu0 0.0
        %1869 = vmatprep.subr.mxu0 0.0
        %1870 = vmatpush1.msra.mxu0 0.0
        %1871 = vmatprep.subr.mxu0 0.0
        %1872 = vmatpush1.msra.mxu0 0.0
        %1873 = vmatprep.subr.mxu0 0.0
        %1874 = vmatpush1.msra.mxu0 0.0
        %1875 = vmatprep.subr.mxu0 0.0
        %1876 = vmatpush1.msra.mxu0 0.0
        %1877 = vmatprep.subr.mxu0 0.0
        %1878 = vmatpush1.msra.mxu0 0.0
        %1879 = vmatprep.subr.mxu0 0.0
        %1880 = vmatpush1.msra.mxu0 0.0
        %1881 = vmatprep.subr.mxu0 0.0
        %1882 = vmatpush1.msra.mxu0 0.0
        %1883 = vmatprep.subr.mxu0 0.0
        %1884 = vmatpush1.msra.mxu0 0.0
        %1885 = vmatprep.subr.mxu0 0.0
        %1886 = vmatpush1.msra.mxu0 0.0
        %1887 = vmatprep.subr.mxu0 0.0
        %1888 = vmatpush1.msra.mxu0 0.0
        %1889 = vmatprep.subr.mxu0 0.0
        %1890 = vmatpush1.msra.mxu0 0.0
        %1891 = vmatprep.subr.mxu0 0.0
        %1892 = vmatpush1.msra.mxu0 0.0
        %1893 = vmatprep.subr.mxu0 0.0
        %1894 = vmatpush1.msra.mxu0 0.0
        %1895 = vmatprep.subr.mxu0 0.0
        %1896 = vmatpush1.msra.mxu0 0.0
        %1897 = vmatprep.subr.mxu0 0.0
        %1898 = vmatpush1.msra.mxu0 %v356
        %1899 = vmatprep.subr.mxu0 0.0
        %1900 = vmatpush2.msra.mxu0 0.0
        %1901 = vmatprep.subr.mxu0 0.0
        %1902 = vmatpush2.msra.mxu0 0.0
        %1903 = vmatprep.subr.mxu0 0.0
        %1904 = vmatpush2.msra.mxu0 0.0
        %1905 = vmatprep.subr.mxu0 0.0
        %1906 = vmatpush2.msra.mxu0 0.0
        %1907 = vmatprep.subr.mxu0 0.0
        %1908 = vmatpush2.msra.mxu0 0.0
        %1909 = vmatprep.subr.mxu0 0.0
        %1910 = vmatpush2.msra.mxu0 0.0
        %1911 = vmatprep.subr.mxu0 0.0
        %1912 = vmatpush2.msra.mxu0 0.0
        %1913 = vmatprep.subr.mxu0 0.0
        %1914 = vmatpush2.msra.mxu0 0.0
        %1915 = vmatprep.subr.mxu0 0.0
        %1916 = vmatpush2.msra.mxu0 0.0
        %1917 = vmatprep.subr.mxu0 0.0
        %1918 = vmatpush2.msra.mxu0 0.0
        %1919 = vmatprep.subr.mxu0 0.0
        %1920 = vmatpush2.msra.mxu0 0.0
        %1921 = vmatprep.subr.mxu0 0.0
        %1922 = vmatpush2.msra.mxu0 0.0
        %1923 = vmatprep.subr.mxu0 0.0
        %1924 = vmatpush2.msra.mxu0 0.0
        %1925 = vmatprep.subr.mxu0 0.0
        %1926 = vmatpush2.msra.mxu0 0.0
        %1927 = vmatprep.subr.mxu0 0.0
        %1928 = vmatpush2.msra.mxu0 0.0
        %1929 = vmatprep.subr.mxu0 0.0
        %1930 = vmatpush2.msra.mxu0 0.0
        %1931 = vmatprep.mubr.f32.mxu0 0.0
        %1932 = vmatmul.mubr.f32.gmra.mxu0 %v1865
        %v1933 = vpop.f32.mrf.mxu0
        %v1934 = vadd.f32 0.0, %v1933
        %v1935 = vpop.f32.mrf.mxu0
        %1936 = vdwg.mxu0
        %v1937 = vld [vmem:[%s5] sm:$0xff]
        %v1938 = vld [vmem:[%s5 + $0x8] sm:$0xff]
        %v1939 = vld [vmem:[%s5 + $0x10] sm:$0xff]
        %v1940 = vld [vmem:[%s5 + $0x18] sm:$0xff]
        %v1941 = vld [vmem:[%s6] sm:$0x1]
        %v1943 = vlaneseq
        %v1944 = vshrl.u32 %v1943, 7
        %v1945 = vsub.s32 0, %v1944
        %v1946 = vrot.slane %v1941, %v1945
        %v1956 = vrot.slane %v1496, 7
        %vm1957 = vcmask 1041409
        %v1958 = vsel %vm1957, %v1956, %v1423
        %v1959 = vrot.slane %v1569, 6
        %vm1960 = vcmask 1042434
        %v1961 = vsel %vm1960, %v1959, %v1958
        %v1962 = vrot.slane %v1642, 5
        %vm1963 = vcmask 1043459
        %v1964 = vsel %vm1963, %v1962, %v1961
        %v1965 = vrot.slane %v1715, 4
        %vm1966 = vcmask 1044484
        %v1967 = vsel %vm1966, %v1965, %v1964
        %v1968 = vrot.slane %v1788, 3
        %vm1969 = vcmask 1045509
        %v1970 = vsel %vm1969, %v1968, %v1967
        %v1971 = vrot.slane %v1861, 2
        %vm1972 = vcmask 1046534
        %v1973 = vsel %vm1972, %v1971, %v1970
        %v1974 = vrot.slane %v1934, 1
        %vm1975 = vcmask 1047559
        %v1976 = vsel %vm1975, %v1974, %v1973
        %v1977 = vsel %vm362, %v1976, 0
        %1979 = vmatprep.subr.mxu0 0.0
        %1980 = vmatpush1.msra.mxu0 0.0
        %1981 = vmatprep.subr.mxu0 0.0
        %1982 = vmatpush1.msra.mxu0 0.0
        %1983 = vmatprep.subr.mxu0 0.0
        %1984 = vmatpush1.msra.mxu0 0.0
        %1985 = vmatprep.subr.mxu0 0.0
        %1986 = vmatpush1.msra.mxu0 0.0
        %1987 = vmatprep.subr.mxu0 0.0
        %1988 = vmatpush1.msra.mxu0 0.0
        %1989 = vmatprep.subr.mxu0 0.0
        %1990 = vmatpush1.msra.mxu0 0.0
        %1991 = vmatprep.subr.mxu0 0.0
        %1992 = vmatpush1.msra.mxu0 0.0
        %1993 = vmatprep.subr.mxu0 0.0
        %1994 = vmatpush1.msra.mxu0 0.0
        %1995 = vmatprep.subr.mxu0 0.0
        %1996 = vmatpush1.msra.mxu0 0.0
        %1997 = vmatprep.subr.mxu0 0.0
        %1998 = vmatpush1.msra.mxu0 0.0
        %1999 = vmatprep.subr.mxu0 0.0
        %2000 = vmatpush1.msra.mxu0 0.0
        %2001 = vmatprep.subr.mxu0 0.0
        %2002 = vmatpush1.msra.mxu0 0.0
        %2003 = vmatprep.subr.mxu0 0.0
        %2004 = vmatpush1.msra.mxu0 %v1940
        %2005 = vmatprep.subr.mxu0 0.0
        %2006 = vmatpush1.msra.mxu0 %v1939
        %2007 = vmatprep.subr.mxu0 0.0
        %2008 = vmatpush1.msra.mxu0 %v1938
        %2009 = vmatprep.subr.mxu0 0.0
        %2010 = vmatpush1.msra.mxu0 %v1937
        %2011 = vmatprep.subr.mxu0 0.0
        %2012 = vmatpush2.msra.mxu0 0.0
        %2013 = vmatprep.subr.mxu0 0.0
        %2014 = vmatpush2.msra.mxu0 0.0
        %2015 = vmatprep.subr.mxu0 0.0
        %2016 = vmatpush2.msra.mxu0 0.0
        %2017 = vmatprep.subr.mxu0 0.0
        %2018 = vmatpush2.msra.mxu0 0.0
        %2019 = vmatprep.subr.mxu0 0.0
        %2020 = vmatpush2.msra.mxu0 0.0
        %2021 = vmatprep.subr.mxu0 0.0
        %2022 = vmatpush2.msra.mxu0 0.0
        %2023 = vmatprep.subr.mxu0 0.0
        %2024 = vmatpush2.msra.mxu0 0.0
        %2025 = vmatprep.subr.mxu0 0.0
        %2026 = vmatpush2.msra.mxu0 0.0
        %2027 = vmatprep.subr.mxu0 0.0
        %2028 = vmatpush2.msra.mxu0 0.0
        %2029 = vmatprep.subr.mxu0 0.0
        %2030 = vmatpush2.msra.mxu0 0.0
        %2031 = vmatprep.subr.mxu0 0.0
        %2032 = vmatpush2.msra.mxu0 0.0
        %2033 = vmatprep.subr.mxu0 0.0
        %2034 = vmatpush2.msra.mxu0 0.0
        %2035 = vmatprep.subr.mxu0 0.0
        %2036 = vmatpush2.msra.mxu0 0.0
        %2037 = vmatprep.subr.mxu0 0.0
        %2038 = vmatpush2.msra.mxu0 0.0
        %2039 = vmatprep.subr.mxu0 0.0
        %2040 = vmatpush2.msra.mxu0 0.0
        %2041 = vmatprep.subr.mxu0 0.0
        %2042 = vmatpush2.msra.mxu0 0.0
        %2043 = vmatprep.mubr.f32.mxu0 0.0
        %2044 = vmatmul.mubr.f32.gmra.mxu0 %v1977
        %v2045 = vpop.f32.mrf.mxu0
        %v2046 = vadd.f32 %v1946, %v2045
        %v2047 = vpop.f32.mrf.mxu0
        %2048 = vdwg.mxu0
        %vm2049 = vcmask 31744
        %2050 = vst.msk [vmem:[%s348] sm:$0xff] %vm2049, %v2046
        %p2051 = scmp.lt.s32.totalorder %s24, 1
        %s2052 = scalar_select %p2051, %s24, 1
        %s2053 = smul.addr %s2052, 8
        %s2054 = scalar_lea.vmem %s7, %s2053
        // Predicated region
        $region61: #{meta_module_forward.1} parent=47 // pred_check
          %p2055 = pneg %p199
        $region62: #{meta_module_forward.1} parent=47 // pred_check_branch
          %2057 = sbr.rel (%p2055) target = $region64
        $region63: #{meta_module_forward.1} parent=47 // pred_region
          _
        $region64: #{meta_module_forward.1} parent=47 // pred_fallthru
          _
      $region48: #{meta_module_forward.1} parent=5 // pred_fallthru
        _
      %p2058 = scmp.le.s32.totalorder 2, %s19
      // Predicated region
      $region65: #{meta_module_forward.1} parent=5 // pred_check
        %p2059 = pneg %p2058
      $region66: #{meta_module_forward.1} parent=5 // pred_check_branch
        %2061 = sbr.rel (%p2059) target = $region68
      $region67: #{meta_module_forward.1} parent=5 // pred_region
        %s2062 = ssub.s32 %s19, 2
        // Predicated region
        $region69: #{meta_module_forward.1} parent=67 // pred_check
          %p2063 = pneg %p205
        $region70: #{meta_module_forward.1} parent=67 // pred_check_branch
          %2065 = sbr.rel (%p2063) target = $region72
        $region71: #{meta_module_forward.1} parent=67 // pred_region
          %p2066 = scmp.lt.s32.totalorder %s25, 1
          %s2067 = scalar_select %p2066, %s25, 1
          %s2068 = smul.addr %s2067, 8
          %s2069 = scalar_lea.vmem %s7, %s2068
        $region72: #{meta_module_forward.1} parent=67 // pred_fallthru
          _
      $region68: #{meta_module_forward.1} parent=5 // pred_fallthru
        _
    $region6: #{meta_module_forward.1} parent=1 // loop_footer
      %s23 = sadd.s32 1, %s19
    $region7: #{meta_module_forward.1} parent=1 // loop_footer_branch
      %18 = sbr.rel target = $region3
    $region8: #{meta_module_forward.1} parent=1 // loop_exit
      _
    %2070 = vsyncpa [#allocation3], 1
    %s2071 = scalar_lea.sflag [#allocation3], 1
    %2072 = vsyncpa %s2071, 1
    %2073 = vsyncpa [#allocation5], 1
    %s2074 = scalar_lea.sflag [#allocation5], 1
    %2075 = vsyncpa %s2074, 1

</llo_original>
